<compile_context>
chip_gen: v5e
topology: v5e:2x2
jax: 0.10.0
libtpu: 0.0.40
codegen_flags: <defaults>
</compile_context>

<pallas_src>
import jax
import jax.numpy as jnp
from jax.experimental import pallas as pl
from jax.experimental.pallas import tpu as pltpu

LATENT_DIM = 50
HIDDEN1 = 100
HIDDEN2 = 1000
N_INPUTS = 256              # n_inputs of the autoencoder (flattened input size)
NEG_SLOPE = 0.01            # F.leaky_relu default negative_slope
SOFTPLUS_THRESHOLD = 20.0   # matches torch.nn.functional.softplus threshold

LANE = 128
SUBLANE = 8
MAX_BATCH_TILE = 1024       # big tile to amortize per-grid-step overhead
MIN_MEGACORE_TILE = 256     # don't shrink below this when splitting for 2 TCs
VMEM_LIMIT_BYTES = 48 << 20  # > v5e's 16 MiB scoped default, < v7x's 64 MiB phys


def _round_up(n, m):
    return ((n + m - 1) // m) * m


def _pad_to(x, rows, cols):
    r, c = x.shape
    if r == rows and c == cols:
        return x
    return jnp.pad(x, ((0, rows - r), (0, cols - c)))


def _leaky_relu(x):
    return jnp.where(x >= 0, x, NEG_SLOPE * x)


def _softplus(x):
    # torch: softplus(x) = log(1 + exp(x)), linear above threshold for stability
    safe = jnp.minimum(x, SOFTPLUS_THRESHOLD)
    return jnp.where(x > SOFTPLUS_THRESHOLD, x, jnp.log1p(jnp.exp(safe)))


def _choose_batch_tile(batch):
    """MXU/sublane-aligned batch tile; ensure >=2 tiles so v7x megacore can
    shard the batch axis across both TensorCores (without dropping below the
    amortization floor of 256 rows)."""
    tb = min(MAX_BATCH_TILE, _round_up(batch, SUBLANE))
    while tb > MIN_MEGACORE_TILE and pl.cdiv(_round_up(batch, SUBLANE), tb) < 2:
        tb = max(SUBLANE, _round_up(tb // 2, SUBLANE))
    return tb


def decoder_kernel(x_ref, w1_ref, b1_ref, w2_ref, b2_ref, w3_ref, b3_ref, out_ref):
    # x and all weights arrive as bf16 (weights are VMEM-resident across batch
    # tiles via constant index_maps). All three matmuls are bf16 x bf16 on the
    # MXU with f32 accumulation; biases and activations are f32; the large
    # intermediates are re-packed to bf16 right after the activation.
    x = x_ref[...]

    h1 = jnp.dot(x, w1_ref[...], preferred_element_type=jnp.float32) + b1_ref[...]
    h1 = _leaky_relu(h1).astype(jnp.bfloat16)

    h2 = jnp.dot(h1, w2_ref[...], preferred_element_type=jnp.float32) + b2_ref[...]
    h2 = _leaky_relu(h2).astype(jnp.bfloat16)

    h3 = jnp.dot(h2, w3_ref[...], preferred_element_type=jnp.float32) + b3_ref[...]
    out_ref[...] = _softplus(h3).astype(out_ref.dtype)


def prepare_params(params):
    """One-time wrapper-side prep: pad feature dims to lane alignment (50->128,
    100->128, 1000->1024) and cast weights to bf16 (biases stay f32).
    Zero-padding the contraction dims is mathematically a no-op."""
    w1, b1, w2, b2, w3, b3 = params
    d_lat = _round_up(w1.shape[0], LANE)
    d_h1 = _round_up(w1.shape[1], LANE)
    d_h2 = _round_up(w2.shape[1], LANE)
    d_out = _round_up(w3.shape[1], LANE)

    w1p = _pad_to(w1, d_lat, d_h1).astype(jnp.bfloat16)
    b1p = _pad_to(b1, 1, d_h1).astype(jnp.float32)
    w2p = _pad_to(w2, d_h1, d_h2).astype(jnp.bfloat16)
    b2p = _pad_to(b2, 1, d_h2).astype(jnp.float32)
    w3p = _pad_to(w3, d_h2, d_out).astype(jnp.bfloat16)
    b3p = _pad_to(b3, 1, d_out).astype(jnp.float32)
    return (w1p, b1p, w2p, b2p, w3p, b3p)


def decoder_forward(x, prepared_params, n_inputs):
    w1, b1, w2, b2, w3, b3 = prepared_params
    B = x.shape[0]
    d_lat = w1.shape[0]
    d_h1, d_h2, d_out = w1.shape[1], w2.shape[1], w3.shape[1]

    tb = _choose_batch_tile(B)
    b_pad = _round_up(B, tb)

    # Pad + cast to bf16 in one wrapper pass (halves the input HBM stream).
    x_p = _pad_to(x, b_pad, d_lat).astype(jnp.bfloat16)

    grid = (b_pad // tb,)

    def resident(shape):
        # Constant block index -> no re-DMA across batch tiles; stays in VMEM.
        return pl.BlockSpec(shape, lambda i: (0, 0))

    out_p = pl.pallas_call(
        decoder_kernel,
        out_shape=jax.ShapeDtypeStruct((b_pad, d_out), jnp.float32),
        grid=grid,
        in_specs=[
            pl.BlockSpec((tb, d_lat), lambda i: (i, 0)),    # x: batch-tiled
            resident((d_lat, d_h1)), resident((1, d_h1)),   # W1, b1
            resident((d_h1, d_h2)), resident((1, d_h2)),    # W2, b2
            resident((d_h2, d_out)), resident((1, d_out)),  # W3, b3
        ],
        out_specs=pl.BlockSpec((tb, d_out), lambda i: (i, 0)),
        compiler_params=pltpu.CompilerParams(
            dimension_semantics=("parallel",),
            vmem_limit_bytes=VMEM_LIMIT_BYTES),
    )(x_p, w1, b1, w2, b2, w3, b3)

    # Slice only what actually needs slicing (avoids a full HBM copy when the
    # batch tile divides B and n_inputs is already lane-aligned).
    if d_out != n_inputs:
        return out_p[:B, :n_inputs]
    if b_pad != B:
        return out_p[:B]
    return out_p


def init_params(key, latent_dim=LATENT_DIM, n_inputs=N_INPUTS):
    """Deterministic synthetic parameters (same shapes as the PyTorch module,
    stored [in_features, out_features] so the kernel computes x @ W + b)."""
    ks = jax.random.split(key, 6)

    def linear(kw, kb, fan_in, fan_out):
        bound = 1.0 / jnp.sqrt(fan_in)
        w = jax.random.uniform(kw, (fan_in, fan_out), jnp.float32, -bound, bound)
        b = jax.random.uniform(kb, (1, fan_out), jnp.float32, -bound, bound)
        return w, b

    w1, b1 = linear(ks[0], ks[1], latent_dim, HIDDEN1)
    w2, b2 = linear(ks[2], ks[3], HIDDEN1, HIDDEN2)
    w3, b3 = linear(ks[4], ks[5], HIDDEN2, n_inputs)
    return (w1, b1, w2, b2, w3, b3)


def reference_forward_bf16(x, prepared_params, n_inputs):
    """Pure-JAX reference mirroring the kernel's arithmetic exactly
    (bf16 operands, f32 MXU accumulation, f32 biases/activations)."""
    w1, b1, w2, b2, w3, b3 = prepared_params
    d_lat = w1.shape[0]
    xp = _pad_to(x, x.shape[0], d_lat).astype(jnp.bfloat16)

    h1 = _leaky_relu(jnp.dot(xp, w1, preferred_element_type=jnp.float32) + b1)
    h2 = _leaky_relu(jnp.dot(h1.astype(jnp.bfloat16), w2,
                             preferred_element_type=jnp.float32) + b2)
    h3 = jnp.dot(h2.astype(jnp.bfloat16), w3,
                 preferred_element_type=jnp.float32) + b3
    return _softplus(h3)[:, :n_inputs]


def reference_forward_f32(x, params):
    """Pure-f32 reference matching the PyTorch Decoder exactly (documents the
    accepted bf16-operand precision contract of the kernel)."""
    w1, b1, w2, b2, w3, b3 = params
    h1 = _leaky_relu(x @ w1 + b1)
    h2 = _leaky_relu(h1 @ w2 + b2)
    return _softplus(h2 @ w3 + b3)


if __name__ == "__main__":
    key = jax.random.PRNGKey(0)
    kx, kp = jax.random.split(key)

    batch = 2
    x = jax.random.normal(kx, (batch, LATENT_DIM), jnp.float32)
    params = init_params(kp)
    prepared = prepare_params(params)

    out = decoder_forward(x, prepared, N_INPUTS)
    out = jax.block_until_ready(out)
    assert out.shape == (batch, N_INPUTS), out.shape

    # Exact check vs a reference that mirrors the kernel's bf16/f32 arithmetic.
    ref_bf16 = reference_forward_bf16(x, prepared, N_INPUTS)
    assert jnp.allclose(out, ref_bf16, atol=1e-4, rtol=1e-4), \
        float(jnp.max(jnp.abs(out - ref_bf16)))

    # Loose check vs the true f32 PyTorch-equivalent forward (precision contract).
    ref_f32 = reference_forward_f32(x, params)
    assert jnp.allclose(out, ref_f32, atol=3e-2, rtol=5e-2), \
        float(jnp.max(jnp.abs(out - ref_f32)))

    print("KERNEL_OK")
</pallas_src>

<mosaic_0001>
module attributes {stable_mosaic.version = 11 : i64} {
  func.func @decoder_kernel(%arg0: i32, %arg1: memref<8x128xbf16, #tpu.memory_space<vmem>>, %arg2: memref<128x128xbf16, #tpu.memory_space<vmem>>, %arg3: memref<1x128xf32, #tpu.memory_space<vmem>>, %arg4: memref<128x1024xbf16, #tpu.memory_space<vmem>>, %arg5: memref<1x1024xf32, #tpu.memory_space<vmem>>, %arg6: memref<1024x256xbf16, #tpu.memory_space<vmem>>, %arg7: memref<1x256xf32, #tpu.memory_space<vmem>>, %arg8: memref<8x256xf32, #tpu.memory_space<vmem>>) attributes {dimension_semantics = [#tpu.dimension_semantics<parallel>], iteration_bounds = array<i64: 1>, scalar_prefetch = 0 : i64, scratch_operands = 0 : i64, tpu.core_type = #tpu.core_type<tc>, window_params = [{transform_indices = @transform_0, window_bounds = array<i64: 8, 128>}, {pipeline_mode = #tpu.pipeline_mode<synchronous>, transform_indices = @transform_1, window_bounds = array<i64: 128, 128>}, {pipeline_mode = #tpu.pipeline_mode<synchronous>, transform_indices = @transform_2, window_bounds = array<i64: 1, 128>}, {pipeline_mode = #tpu.pipeline_mode<synchronous>, transform_indices = @transform_3, window_bounds = array<i64: 128, 1024>}, {pipeline_mode = #tpu.pipeline_mode<synchronous>, transform_indices = @transform_4, window_bounds = array<i64: 1, 1024>}, {pipeline_mode = #tpu.pipeline_mode<synchronous>, transform_indices = @transform_5, window_bounds = array<i64: 1024, 256>}, {pipeline_mode = #tpu.pipeline_mode<synchronous>, transform_indices = @transform_6, window_bounds = array<i64: 1, 256>}, {transform_indices = @transform_7, window_bounds = array<i64: 8, 256>}]} {
    %c0 = arith.constant 0 : index
    %c0_0 = arith.constant 0 : index
    %0 = vector.load %arg1[%c0, %c0_0] : memref<8x128xbf16, #tpu.memory_space<vmem>>, vector<8x128xbf16>
    %c0_1 = arith.constant 0 : index
    %c0_2 = arith.constant 0 : index
    %1 = vector.load %arg2[%c0_1, %c0_2] : memref<128x128xbf16, #tpu.memory_space<vmem>>, vector<128x128xbf16>
    %cst = arith.constant dense<0.000000e+00> : vector<8x128xf32>
    %2 = tpu.matmul %0, %1, %cst {dimension_numbers = #tpu.dot_dimension_numbers<[1], [0], [0], [1], [0, 0, 1, 1], [], []>} : vector<8x128xbf16>, vector<128x128xbf16>, vector<8x128xf32> -> vector<8x128xf32>
    %c0_3 = arith.constant 0 : index
    %c0_4 = arith.constant 0 : index
    %3 = vector.load %arg3[%c0_3, %c0_4] : memref<1x128xf32, #tpu.memory_space<vmem>>, vector<1x128xf32>
    %4 = vector.broadcast %3 : vector<1x128xf32> to vector<8x128xf32>
    %5 = arith.addf %2, %4 : vector<8x128xf32>
    %cst_5 = arith.constant 0.000000e+00 : f32
    %6 = vector.broadcast %cst_5 : f32 to vector<8x128xf32>
    %7 = arith.cmpf oge, %5, %6 : vector<8x128xf32>
    %cst_6 = arith.constant 0.00999999977 : f32
    %8 = vector.broadcast %cst_6 : f32 to vector<8x128xf32>
    %9 = arith.mulf %8, %5 : vector<8x128xf32>
    %10 = arith.select %7, %5, %9 : vector<8x128xi1>, vector<8x128xf32>
    %11 = arith.truncf %10 : vector<8x128xf32> to vector<8x128xbf16>
    %c0_7 = arith.constant 0 : index
    %c0_8 = arith.constant 0 : index
    %12 = vector.load %arg4[%c0_7, %c0_8] : memref<128x1024xbf16, #tpu.memory_space<vmem>>, vector<128x1024xbf16>
    %cst_9 = arith.constant dense<0.000000e+00> : vector<8x1024xf32>
    %13 = tpu.matmul %11, %12, %cst_9 {dimension_numbers = #tpu.dot_dimension_numbers<[1], [0], [0], [1], [0, 0, 1, 1], [], []>} : vector<8x128xbf16>, vector<128x1024xbf16>, vector<8x1024xf32> -> vector<8x1024xf32>
    %c0_10 = arith.constant 0 : index
    %c0_11 = arith.constant 0 : index
    %14 = vector.load %arg5[%c0_10, %c0_11] : memref<1x1024xf32, #tpu.memory_space<vmem>>, vector<1x1024xf32>
    %15 = vector.broadcast %14 : vector<1x1024xf32> to vector<8x1024xf32>
    %16 = arith.addf %13, %15 : vector<8x1024xf32>
    %cst_12 = arith.constant 0.000000e+00 : f32
    %17 = vector.broadcast %cst_12 : f32 to vector<8x1024xf32>
    %18 = arith.cmpf oge, %16, %17 : vector<8x1024xf32>
    %cst_13 = arith.constant 0.00999999977 : f32
    %19 = vector.broadcast %cst_13 : f32 to vector<8x1024xf32>
    %20 = arith.mulf %19, %16 : vector<8x1024xf32>
    %21 = arith.select %18, %16, %20 : vector<8x1024xi1>, vector<8x1024xf32>
    %22 = arith.truncf %21 : vector<8x1024xf32> to vector<8x1024xbf16>
    %c0_14 = arith.constant 0 : index
    %c0_15 = arith.constant 0 : index
    %23 = vector.load %arg6[%c0_14, %c0_15] : memref<1024x256xbf16, #tpu.memory_space<vmem>>, vector<1024x256xbf16>
    %cst_16 = arith.constant dense<0.000000e+00> : vector<8x256xf32>
    %24 = tpu.matmul %22, %23, %cst_16 {dimension_numbers = #tpu.dot_dimension_numbers<[1], [0], [0], [1], [0, 0, 1, 1], [], []>} : vector<8x1024xbf16>, vector<1024x256xbf16>, vector<8x256xf32> -> vector<8x256xf32>
    %c0_17 = arith.constant 0 : index
    %c0_18 = arith.constant 0 : index
    %25 = vector.load %arg7[%c0_17, %c0_18] : memref<1x256xf32, #tpu.memory_space<vmem>>, vector<1x256xf32>
    %26 = vector.broadcast %25 : vector<1x256xf32> to vector<8x256xf32>
    %27 = arith.addf %24, %26 : vector<8x256xf32>
    %cst_19 = arith.constant 2.000000e+01 : f32
    %28 = vector.broadcast %cst_19 : f32 to vector<8x256xf32>
    %29 = arith.minimumf %27, %28 : vector<8x256xf32>
    %cst_20 = arith.constant 2.000000e+01 : f32
    %30 = vector.broadcast %cst_20 : f32 to vector<8x256xf32>
    %31 = arith.cmpf ogt, %27, %30 : vector<8x256xf32>
    %32 = math.exp %29 : vector<8x256xf32>
    %33 = math.log1p %32 : vector<8x256xf32>
    %34 = arith.select %31, %27, %33 : vector<8x256xi1>, vector<8x256xf32>
    %c0_21 = arith.constant 0 : index
    %c0_22 = arith.constant 0 : index
    %35 = vector.load %arg8[%c0_21, %c0_22] : memref<8x256xf32, #tpu.memory_space<vmem>>, vector<8x256xf32>
    tpu.vector_store %arg8[%c0_21, %c0_22], %34 {strides = array<i32>} : memref<8x256xf32, #tpu.memory_space<vmem>>, vector<8x256xf32>,
    return
  }
  func.func @transform_0(%arg0: i32) -> (i32, i32) {
    %c0_i32 = arith.constant 0 : i32
    %c0_i32_0 = arith.constant 0 : i32
    return %arg0, %c0_i32 : i32, i32
  }
  func.func @transform_1(%arg0: i32) -> (i32, i32) {
    %c0_i32 = arith.constant 0 : i32
    %c0_i32_0 = arith.constant 0 : i32
    %c0_i32_1 = arith.constant 0 : i32
    return %c0_i32, %c0_i32_0 : i32, i32
  }
  func.func @transform_2(%arg0: i32) -> (i32, i32) {
    %c0_i32 = arith.constant 0 : i32
    %c0_i32_0 = arith.constant 0 : i32
    %c0_i32_1 = arith.constant 0 : i32
    return %c0_i32, %c0_i32_0 : i32, i32
  }
  func.func @transform_3(%arg0: i32) -> (i32, i32) {
    %c0_i32 = arith.constant 0 : i32
    %c0_i32_0 = arith.constant 0 : i32
    %c0_i32_1 = arith.constant 0 : i32
    return %c0_i32, %c0_i32_0 : i32, i32
  }
  func.func @transform_4(%arg0: i32) -> (i32, i32) {
    %c0_i32 = arith.constant 0 : i32
    %c0_i32_0 = arith.constant 0 : i32
    %c0_i32_1 = arith.constant 0 : i32
    return %c0_i32, %c0_i32_0 : i32, i32
  }
  func.func @transform_5(%arg0: i32) -> (i32, i32) {
    %c0_i32 = arith.constant 0 : i32
    %c0_i32_0 = arith.constant 0 : i32
    %c0_i32_1 = arith.constant 0 : i32
    return %c0_i32, %c0_i32_0 : i32, i32
  }
  func.func @transform_6(%arg0: i32) -> (i32, i32) {
    %c0_i32 = arith.constant 0 : i32
    %c0_i32_0 = arith.constant 0 : i32
    %c0_i32_1 = arith.constant 0 : i32
    return %c0_i32, %c0_i32_0 : i32, i32
  }
  func.func @transform_7(%arg0: i32) -> (i32, i32) {
    %c0_i32 = arith.constant 0 : i32
    %c0_i32_0 = arith.constant 0 : i32
    return %arg0, %c0_i32 : i32, i32
  }
}

</mosaic_0001>

<llo_original>
// kernel: tpu_custom_call.1
$region0: #{tpu_custom_call.1}
  #allocation0 [shape = 'u32[]', space=smem, size = 0x4, offset = 0x4, fixed_abs, tag = 'smem constant byte address 0x4 - core index']
  #allocation1 [shape = 'u32[72,128]{1,0:T(1,128)}', space=vmem, size = 0x9000, scoped, tag = 'internal scratch']
  %s0 = inlined_call_operand.hbm [shape: bf16[8,128], index: 0, kind: input, shape index: {}]
  %s1 = inlined_call_operand.hbm [shape: bf16[128,128], index: 1, kind: input, shape index: {}]
  %s2 = inlined_call_operand.vmem [shape: f32[1,128], index: 2, kind: input, shape index: {}]
  %s3 = inlined_call_operand.hbm [shape: bf16[128,1024], index: 3, kind: input, shape index: {}]
  %s4 = inlined_call_operand.hbm [shape: f32[1,1024], index: 4, kind: input, shape index: {}]
  %s5 = inlined_call_operand.hbm [shape: bf16[1024,256], index: 5, kind: input, shape index: {}]
  %s6 = inlined_call_operand.vmem [shape: f32[1,256], index: 6, kind: input, shape index: {}]
  %s7 = inlined_call_operand.hbm [shape: f32[8,256], index: 7, kind: output, shape index: {}]
  %s8 = sld [smem:[#allocation0]]
  $region58: #{tpu_custom_call.1} parent=0
    _
  %s10 = ssub.s32 1, %s8
  %s11 = scalar_select 0, %s10, %s8
  $region1: #{tpu_custom_call.1} parent=0
    #allocation2 [shape = 'u8[2048]{0}', space=vmem, size = 0x800, scoped, tag = 'input window, operand 0, single buffered']
    #allocation3 [shape = 's32[1]{0}', space=sflag, size = 0x4, scoped, tag = 'scoped memory for tpu_custom_call.1']
    #allocation4 [shape = 's32[1]{0}', space=sflag, size = 0x4, scoped, tag = 'scoped memory for tpu_custom_call.1']
    #allocation5 [shape = 'u8[32768]{0}', space=vmem, size = 0x8000, scoped, tag = 'input window, operand 1, single buffered']
    #allocation6 [shape = 's32[1]{0}', space=sflag, size = 0x4, scoped, tag = 'scoped memory for tpu_custom_call.1']
    #allocation7 [shape = 'u8[262144]{0}', space=vmem, size = 0x40000, scoped, tag = 'input window, operand 3, single buffered']
    #allocation8 [shape = 'u8[4096]{0}', space=vmem, size = 0x1000, scoped, tag = 'input window, operand 4, single buffered']
    #allocation9 [shape = 's32[1]{0}', space=sflag, size = 0x4, scoped, tag = 'scoped memory for tpu_custom_call.1']
    #allocation10 [shape = 'u8[524288]{0}', space=vmem, size = 0x80000, scoped, tag = 'input window, operand 5, single buffered']
    #allocation11 [shape = 'u8[8192]{0}', space=vmem, size = 0x2000, scoped, tag = 'output window, operand 0, single buffered']
    %12 = vsyncpa [#allocation3], 0
    %13 = vsyncpa [#allocation6], 0
    %14 = vsyncpa [#allocation9], 0
    %15 = vsyncpa [#allocation4], 0
    // Predicated region
    $region2: #{tpu_custom_call.1} parent=1 // pred_check
      _
    $region3: #{tpu_custom_call.1} parent=1 // pred_check_branch
      %17 = sbr.rel (0) target = $region5
    $region4: #{tpu_custom_call.1} parent=1 // pred_region
      %19 = vsyncadd [#allocation3], 0
      %s21 = sshll.u32 %s0, 4
      %s22 = int_to_ptr.hbm [resolvable:$true] %s21
      %s23 = sshll.u32 [#allocation2], 4
      %s24 = int_to_ptr.vmem [resolvable:$true] %s23
      %26 = dma.hbm_to_vmem [thread:$0]  %s22, 64, %s24, [#allocation3]
    $region5: #{tpu_custom_call.1} parent=1 // pred_fallthru
      _
    // Predicated region
    $region6: #{tpu_custom_call.1} parent=1 // pred_check
      _
    $region7: #{tpu_custom_call.1} parent=1 // pred_check_branch
      %28 = sbr.rel (0) target = $region9
    $region8: #{tpu_custom_call.1} parent=1 // pred_region
      %30 = vsyncadd [#allocation6], 0
      %s31 = sshll.u32 %s1, 4
      %s32 = int_to_ptr.hbm [resolvable:$true] %s31
      %s33 = sshll.u32 [#allocation5], 4
      %s34 = int_to_ptr.vmem [resolvable:$true] %s33
      %39 = dma.hbm_to_vmem [thread:$0]  %s32, 1024, %s34, [#allocation6], 64, 64, 4
    $region9: #{tpu_custom_call.1} parent=1 // pred_fallthru
      _
    // Predicated region
    $region10: #{tpu_custom_call.1} parent=1 // pred_check
      _
    $region11: #{tpu_custom_call.1} parent=1 // pred_check_branch
      %41 = sbr.rel (0) target = $region13
    $region12: #{tpu_custom_call.1} parent=1 // pred_region
      _
    $region13: #{tpu_custom_call.1} parent=1 // pred_fallthru
      _
    // Predicated region
    $region14: #{tpu_custom_call.1} parent=1 // pred_check
      _
    $region15: #{tpu_custom_call.1} parent=1 // pred_check_branch
      %43 = sbr.rel (0) target = $region17
    $region16: #{tpu_custom_call.1} parent=1 // pred_region
      %45 = vsyncadd [#allocation6], 0
      %s46 = sshll.u32 %s3, 4
      %s47 = int_to_ptr.hbm [resolvable:$true] %s46
      %s48 = sshll.u32 [#allocation7], 4
      %s49 = int_to_ptr.vmem [resolvable:$true] %s48
      %54 = dma.hbm_to_vmem [thread:$0]  %s47, 8192, %s49, [#allocation6], 512, 512, 32
    $region17: #{tpu_custom_call.1} parent=1 // pred_fallthru
      _
    // Predicated region
    $region18: #{tpu_custom_call.1} parent=1 // pred_check
      _
    $region19: #{tpu_custom_call.1} parent=1 // pred_check_branch
      %56 = sbr.rel (0) target = $region21
    $region20: #{tpu_custom_call.1} parent=1 // pred_region
      %58 = vsyncadd [#allocation9], 0
      %s60 = sshll.u32 %s4, 4
      %s61 = int_to_ptr.hbm [resolvable:$true] %s60
      %s62 = sshll.u32 [#allocation8], 4
      %s63 = int_to_ptr.vmem [resolvable:$true] %s62
      %65 = dma.hbm_to_vmem [thread:$0]  %s61, 128, %s63, [#allocation9]
    $region21: #{tpu_custom_call.1} parent=1 // pred_fallthru
      _
    // Predicated region
    $region22: #{tpu_custom_call.1} parent=1 // pred_check
      _
    $region23: #{tpu_custom_call.1} parent=1 // pred_check_branch
      %67 = sbr.rel (0) target = $region25
    $region24: #{tpu_custom_call.1} parent=1 // pred_region
      %69 = vsyncadd [#allocation9], 0
      %s70 = sshll.u32 %s5, 4
      %s71 = int_to_ptr.hbm [resolvable:$true] %s70
      %s72 = sshll.u32 [#allocation10], 4
      %s73 = int_to_ptr.vmem [resolvable:$true] %s72
      %78 = dma.hbm_to_vmem [thread:$0]  %s71, 16384, %s73, [#allocation9], 128, 128, 8
    $region25: #{tpu_custom_call.1} parent=1 // pred_fallthru
      _
    // Predicated region
    $region26: #{tpu_custom_call.1} parent=1 // pred_check
      _
    $region27: #{tpu_custom_call.1} parent=1 // pred_check_branch
      %80 = sbr.rel (0) target = $region29
    $region28: #{tpu_custom_call.1} parent=1 // pred_region
      _
    $region29: #{tpu_custom_call.1} parent=1 // pred_fallthru
      _
    // Predicated region
    $region30: #{tpu_custom_call.1} parent=1 // pred_check
      _
    $region31: #{tpu_custom_call.1} parent=1 // pred_check_branch
      %82 = sbr.rel (0) target = $region33
    $region32: #{tpu_custom_call.1} parent=1 // pred_region
      %84 = dma.done [#allocation3], 64
    $region33: #{tpu_custom_call.1} parent=1 // pred_fallthru
      _
    // Predicated region
    $region34: #{tpu_custom_call.1} parent=1 // pred_check
      _
    $region35: #{tpu_custom_call.1} parent=1 // pred_check_branch
      %86 = sbr.rel (0) target = $region37
    $region36: #{tpu_custom_call.1} parent=1 // pred_region
      %88 = dma.done [#allocation6], 1024
    $region37: #{tpu_custom_call.1} parent=1 // pred_fallthru
      _
    // Predicated region
    $region38: #{tpu_custom_call.1} parent=1 // pred_check
      _
    $region39: #{tpu_custom_call.1} parent=1 // pred_check_branch
      %90 = sbr.rel (0) target = $region41
    $region40: #{tpu_custom_call.1} parent=1 // pred_region
      %92 = dma.done [#allocation6], 8192
    $region41: #{tpu_custom_call.1} parent=1 // pred_fallthru
      _
    // Predicated region
    $region42: #{tpu_custom_call.1} parent=1 // pred_check
      _
    $region43: #{tpu_custom_call.1} parent=1 // pred_check_branch
      %94 = sbr.rel (0) target = $region45
    $region44: #{tpu_custom_call.1} parent=1 // pred_region
      %96 = dma.done [#allocation9], 128
    $region45: #{tpu_custom_call.1} parent=1 // pred_fallthru
      _
    // Predicated region
    $region46: #{tpu_custom_call.1} parent=1 // pred_check
      _
    $region47: #{tpu_custom_call.1} parent=1 // pred_check_branch
      %98 = sbr.rel (0) target = $region49
    $region48: #{tpu_custom_call.1} parent=1 // pred_region
      %100 = dma.done [#allocation9], 16384
    $region49: #{tpu_custom_call.1} parent=1 // pred_fallthru
      _
    %v101 = vld [vmem:[#allocation2] sm:$0xf]
    %v102 = vld [vmem:[#allocation5] sm:$0xf]
    %v103 = vld [vmem:[#allocation5 + $0x4] sm:$0xf]
    %v104 = vld [vmem:[#allocation5 + $0x8] sm:$0xf]
    %v105 = vld [vmem:[#allocation5 + $0xc] sm:$0xf]
    %v106 = vld [vmem:[#allocation5 + $0x10] sm:$0xf]
    %v107 = vld [vmem:[#allocation5 + $0x14] sm:$0xf]
    %v108 = vld [vmem:[#allocation5 + $0x18] sm:$0xf]
    %v109 = vld [vmem:[#allocation5 + $0x1c] sm:$0xf]
    %v110 = vld [vmem:[#allocation5 + $0x20] sm:$0xf]
    %v111 = vld [vmem:[#allocation5 + $0x24] sm:$0xf]
    %v112 = vld [vmem:[#allocation5 + $0x28] sm:$0xf]
    %v113 = vld [vmem:[#allocation5 + $0x2c] sm:$0xf]
    %v114 = vld [vmem:[#allocation5 + $0x30] sm:$0xf]
    %v115 = vld [vmem:[#allocation5 + $0x34] sm:$0xf]
    %v116 = vld [vmem:[#allocation5 + $0x38] sm:$0xf]
    %v117 = vld [vmem:[#allocation5 + $0x3c] sm:$0xf]
    %v118 = vld [vmem:[%s2] sm:$0x1]
    %v120 = vperm.slane %v118, 0
    %v138 = vunpack.c.l.b16 %v102
    %v139 = vunpack.c.l.b16 %v103
    %v140 = vunpack.c.l.b16 %v104
    %v141 = vunpack.c.l.b16 %v105
    %v142 = vunpack.c.l.b16 %v106
    %v143 = vunpack.c.l.b16 %v107
    %v144 = vunpack.c.l.b16 %v108
    %v145 = vunpack.c.l.b16 %v109
    %v146 = vunpack.c.l.b16 %v110
    %v147 = vunpack.c.l.b16 %v111
    %v148 = vunpack.c.l.b16 %v112
    %v149 = vunpack.c.l.b16 %v113
    %v150 = vunpack.c.l.b16 %v114
    %v151 = vunpack.c.l.b16 %v115
    %v152 = vunpack.c.l.b16 %v116
    %v153 = vunpack.c.l.b16 %v117
    %v154 = vpack.c.b16 %v139, %v138
    %v155 = vpack.c.b16 %v141, %v140
    %v156 = vpack.c.b16 %v143, %v142
    %v157 = vpack.c.b16 %v145, %v144
    %v158 = vpack.c.b16 %v147, %v146
    %v159 = vpack.c.b16 %v149, %v148
    %v160 = vpack.c.b16 %v151, %v150
    %v161 = vpack.c.b16 %v153, %v152
    %170 = vmatpush.bf16.msra.mxu0 %v161
    %171 = vmatpush.bf16.msra.mxu0 %v160
    %172 = vmatpush.bf16.msra.mxu0 %v159
    %173 = vmatpush.bf16.msra.mxu0 %v158
    %174 = vmatpush.bf16.msra.mxu0 %v157
    %175 = vmatpush.bf16.msra.mxu0 %v156
    %176 = vmatpush.bf16.msra.mxu0 %v155
    %177 = vmatpush.bf16.msra.mxu0 %v154
    %178 = vmatmul.bf16.gmra.mxu0 %v101
    %v179 = vpop.f32.mrf.mxu0
    %v180 = vadd.f32 %v120, %v179
    %v181 = vpop.f32.mrf.mxu0
    %182 = vdwg.mxu0
    %vm183 = vcmp.ge.f32.partialorder %v180, 0.0
    %v184 = vmul.f32 %v180, 0.01
    %v185 = vsel %vm183, %v180, %v184
    %v186 = vpack.c.bf16 %v185, %v185
    %v187 = vld [vmem:[#allocation7] sm:$0xff]
    %v188 = vld [vmem:[#allocation7 + $0x8] sm:$0xff]
    %v189 = vld [vmem:[#allocation7 + $0x10] sm:$0xff]
    %v190 = vld [vmem:[#allocation7 + $0x18] sm:$0xff]
    %v191 = vld [vmem:[#allocation7 + $0x20] sm:$0xff]
    %v192 = vld [vmem:[#allocation7 + $0x28] sm:$0xff]
    %v193 = vld [vmem:[#allocation7 + $0x30] sm:$0xff]
    %v194 = vld [vmem:[#allocation7 + $0x38] sm:$0xff]
    %v195 = vld [vmem:[#allocation7 + $0x40] sm:$0xff]
    %v196 = vld [vmem:[#allocation7 + $0x48] sm:$0xff]
    %v197 = vld [vmem:[#allocation7 + $0x50] sm:$0xff]
    %v198 = vld [vmem:[#allocation7 + $0x58] sm:$0xff]
    %v199 = vld [vmem:[#allocation7 + $0x60] sm:$0xff]
    %v200 = vld [vmem:[#allocation7 + $0x68] sm:$0xff]
    %v201 = vld [vmem:[#allocation7 + $0x70] sm:$0xff]
    %v202 = vld [vmem:[#allocation7 + $0x78] sm:$0xff]
    %v203 = vld [vmem:[#allocation7 + $0x80] sm:$0xff]
    %v204 = vld [vmem:[#allocation7 + $0x88] sm:$0xff]
    %v205 = vld [vmem:[#allocation7 + $0x90] sm:$0xff]
    %v206 = vld [vmem:[#allocation7 + $0x98] sm:$0xff]
    %v207 = vld [vmem:[#allocation7 + $0xa0] sm:$0xff]
    %v208 = vld [vmem:[#allocation7 + $0xa8] sm:$0xff]
    %v209 = vld [vmem:[#allocation7 + $0xb0] sm:$0xff]
    %v210 = vld [vmem:[#allocation7 + $0xb8] sm:$0xff]
    %v211 = vld [vmem:[#allocation7 + $0xc0] sm:$0xff]
    %v212 = vld [vmem:[#allocation7 + $0xc8] sm:$0xff]
    %v213 = vld [vmem:[#allocation7 + $0xd0] sm:$0xff]
    %v214 = vld [vmem:[#allocation7 + $0xd8] sm:$0xff]
    %v215 = vld [vmem:[#allocation7 + $0xe0] sm:$0xff]
    %v216 = vld [vmem:[#allocation7 + $0xe8] sm:$0xff]
    %v217 = vld [vmem:[#allocation7 + $0xf0] sm:$0xff]
    %v218 = vld [vmem:[#allocation7 + $0xf8] sm:$0xff]
    %v219 = vld [vmem:[#allocation7 + $0x100] sm:$0xff]
    %v220 = vld [vmem:[#allocation7 + $0x108] sm:$0xff]
    %v221 = vld [vmem:[#allocation7 + $0x110] sm:$0xff]
    %v222 = vld [vmem:[#allocation7 + $0x118] sm:$0xff]
    %v223 = vld [vmem:[#allocation7 + $0x120] sm:$0xff]
    %v224 = vld [vmem:[#allocation7 + $0x128] sm:$0xff]
    %v225 = vld [vmem:[#allocation7 + $0x130] sm:$0xff]
    %v226 = vld [vmem:[#allocation7 + $0x138] sm:$0xff]
    %v227 = vld [vmem:[#allocation7 + $0x140] sm:$0xff]
    %v228 = vld [vmem:[#allocation7 + $0x148] sm:$0xff]
    %v229 = vld [vmem:[#allocation7 + $0x150] sm:$0xff]
    %v230 = vld [vmem:[#allocation7 + $0x158] sm:$0xff]
    %v231 = vld [vmem:[#allocation7 + $0x160] sm:$0xff]
    %v232 = vld [vmem:[#allocation7 + $0x168] sm:$0xff]
    %v233 = vld [vmem:[#allocation7 + $0x170] sm:$0xff]
    %v234 = vld [vmem:[#allocation7 + $0x178] sm:$0xff]
    %v235 = vld [vmem:[#allocation7 + $0x180] sm:$0xff]
    %v236 = vld [vmem:[#allocation7 + $0x188] sm:$0xff]
    %v237 = vld [vmem:[#allocation7 + $0x190] sm:$0xff]
    %v238 = vld [vmem:[#allocation7 + $0x198] sm:$0xff]
    %v239 = vld [vmem:[#allocation7 + $0x1a0] sm:$0xff]
    %v240 = vld [vmem:[#allocation7 + $0x1a8] sm:$0xff]
    %v241 = vld [vmem:[#allocation7 + $0x1b0] sm:$0xff]
    %v242 = vld [vmem:[#allocation7 + $0x1b8] sm:$0xff]
    %v243 = vld [vmem:[#allocation7 + $0x1c0] sm:$0xff]
    %v244 = vld [vmem:[#allocation7 + $0x1c8] sm:$0xff]
    %v245 = vld [vmem:[#allocation7 + $0x1d0] sm:$0xff]
    %v246 = vld [vmem:[#allocation7 + $0x1d8] sm:$0xff]
    %v247 = vld [vmem:[#allocation7 + $0x1e0] sm:$0xff]
    %v248 = vld [vmem:[#allocation7 + $0x1e8] sm:$0xff]
    %v249 = vld [vmem:[#allocation7 + $0x1f0] sm:$0xff]
    %v250 = vld [vmem:[#allocation7 + $0x1f8] sm:$0xff]
    %v251 = vld [vmem:[#allocation8] sm:$0xff]
    %v253 = vperm.slane %v251, 0
    %v254 = vperm.slane %v251, 1
    %v255 = vperm.slane %v251, 2
    %v256 = vperm.slane %v251, 3
    %v257 = vperm.slane %v251, 4
    %v258 = vperm.slane %v251, 5
    %v259 = vperm.slane %v251, 6
    %v260 = vperm.slane %v251, 7
    %v333 = vunpack.c.l.b16 %v187
    %v334 = vunpack.c.h.b16 %v187
    %v335 = vunpack.c.l.b16 %v188
    %v336 = vunpack.c.h.b16 %v188
    %v337 = vunpack.c.l.b16 %v189
    %v338 = vunpack.c.h.b16 %v189
    %v339 = vunpack.c.l.b16 %v190
    %v340 = vunpack.c.h.b16 %v190
    %v341 = vunpack.c.l.b16 %v191
    %v342 = vunpack.c.h.b16 %v191
    %v343 = vunpack.c.l.b16 %v192
    %v344 = vunpack.c.h.b16 %v192
    %v345 = vunpack.c.l.b16 %v193
    %v346 = vunpack.c.h.b16 %v193
    %v347 = vunpack.c.l.b16 %v194
    %v348 = vunpack.c.h.b16 %v194
    %v349 = vunpack.c.l.b16 %v195
    %v350 = vunpack.c.h.b16 %v195
    %v351 = vunpack.c.l.b16 %v196
    %v352 = vunpack.c.h.b16 %v196
    %v353 = vunpack.c.l.b16 %v197
    %v354 = vunpack.c.h.b16 %v197
    %v355 = vunpack.c.l.b16 %v198
    %v356 = vunpack.c.h.b16 %v198
    %v357 = vunpack.c.l.b16 %v199
    %v358 = vunpack.c.h.b16 %v199
    %v359 = vunpack.c.l.b16 %v200
    %v360 = vunpack.c.h.b16 %v200
    %v361 = vunpack.c.l.b16 %v201
    %v362 = vunpack.c.h.b16 %v201
    %v363 = vunpack.c.l.b16 %v202
    %v364 = vunpack.c.h.b16 %v202
    %v365 = vunpack.c.l.b16 %v203
    %v366 = vunpack.c.h.b16 %v203
    %v367 = vunpack.c.l.b16 %v204
    %v368 = vunpack.c.h.b16 %v204
    %v369 = vunpack.c.l.b16 %v205
    %v370 = vunpack.c.h.b16 %v205
    %v371 = vunpack.c.l.b16 %v206
    %v372 = vunpack.c.h.b16 %v206
    %v373 = vunpack.c.l.b16 %v207
    %v374 = vunpack.c.h.b16 %v207
    %v375 = vunpack.c.l.b16 %v208
    %v376 = vunpack.c.h.b16 %v208
    %v377 = vunpack.c.l.b16 %v209
    %v378 = vunpack.c.h.b16 %v209
    %v379 = vunpack.c.l.b16 %v210
    %v380 = vunpack.c.h.b16 %v210
    %v381 = vunpack.c.l.b16 %v211
    %v382 = vunpack.c.h.b16 %v211
    %v383 = vunpack.c.l.b16 %v212
    %v384 = vunpack.c.h.b16 %v212
    %v385 = vunpack.c.l.b16 %v213
    %v386 = vunpack.c.h.b16 %v213
    %v387 = vunpack.c.l.b16 %v214
    %v388 = vunpack.c.h.b16 %v214
    %v389 = vunpack.c.l.b16 %v215
    %v390 = vunpack.c.h.b16 %v215
    %v391 = vunpack.c.l.b16 %v216
    %v392 = vunpack.c.h.b16 %v216
    %v393 = vunpack.c.l.b16 %v217
    %v394 = vunpack.c.h.b16 %v217
    %v395 = vunpack.c.l.b16 %v218
    %v396 = vunpack.c.h.b16 %v218
    %v397 = vunpack.c.l.b16 %v219
    %v398 = vunpack.c.h.b16 %v219
    %v399 = vunpack.c.l.b16 %v220
    %v400 = vunpack.c.h.b16 %v220
    %v401 = vunpack.c.l.b16 %v221
    %v402 = vunpack.c.h.b16 %v221
    %v403 = vunpack.c.l.b16 %v222
    %v404 = vunpack.c.h.b16 %v222
    %v405 = vunpack.c.l.b16 %v223
    %v406 = vunpack.c.h.b16 %v223
    %v407 = vunpack.c.l.b16 %v224
    %v408 = vunpack.c.h.b16 %v224
    %v409 = vunpack.c.l.b16 %v225
    %v410 = vunpack.c.h.b16 %v225
    %v411 = vunpack.c.l.b16 %v226
    %v412 = vunpack.c.h.b16 %v226
    %v413 = vunpack.c.l.b16 %v227
    %v414 = vunpack.c.h.b16 %v227
    %v415 = vunpack.c.l.b16 %v228
    %v416 = vunpack.c.h.b16 %v228
    %v417 = vunpack.c.l.b16 %v229
    %v418 = vunpack.c.h.b16 %v229
    %v419 = vunpack.c.l.b16 %v230
    %v420 = vunpack.c.h.b16 %v230
    %v421 = vunpack.c.l.b16 %v231
    %v422 = vunpack.c.h.b16 %v231
    %v423 = vunpack.c.l.b16 %v232
    %v424 = vunpack.c.h.b16 %v232
    %v425 = vunpack.c.l.b16 %v233
    %v426 = vunpack.c.h.b16 %v233
    %v427 = vunpack.c.l.b16 %v234
    %v428 = vunpack.c.h.b16 %v234
    %v429 = vunpack.c.l.b16 %v235
    %v430 = vunpack.c.h.b16 %v235
    %v431 = vunpack.c.l.b16 %v236
    %v432 = vunpack.c.h.b16 %v236
    %v433 = vunpack.c.l.b16 %v237
    %v434 = vunpack.c.h.b16 %v237
    %v435 = vunpack.c.l.b16 %v238
    %v436 = vunpack.c.h.b16 %v238
    %v437 = vunpack.c.l.b16 %v239
    %v438 = vunpack.c.h.b16 %v239
    %v439 = vunpack.c.l.b16 %v240
    %v440 = vunpack.c.h.b16 %v240
    %v441 = vunpack.c.l.b16 %v241
    %v442 = vunpack.c.h.b16 %v241
    %v443 = vunpack.c.l.b16 %v242
    %v444 = vunpack.c.h.b16 %v242
    %v445 = vunpack.c.l.b16 %v243
    %v446 = vunpack.c.h.b16 %v243
    %v447 = vunpack.c.l.b16 %v244
    %v448 = vunpack.c.h.b16 %v244
    %v449 = vunpack.c.l.b16 %v245
    %v450 = vunpack.c.h.b16 %v245
    %v451 = vunpack.c.l.b16 %v246
    %v452 = vunpack.c.h.b16 %v246
    %v453 = vunpack.c.l.b16 %v247
    %v454 = vunpack.c.h.b16 %v247
    %v455 = vunpack.c.l.b16 %v248
    %v456 = vunpack.c.h.b16 %v248
    %v457 = vunpack.c.l.b16 %v249
    %v458 = vunpack.c.h.b16 %v249
    %v459 = vunpack.c.l.b16 %v250
    %v460 = vunpack.c.h.b16 %v250
    %v461 = vpack.c.b16 %v341, %v333
    %v462 = vpack.c.b16 %v342, %v334
    %v463 = vpack.c.b16 %v343, %v335
    %v464 = vpack.c.b16 %v344, %v336
    %v465 = vpack.c.b16 %v345, %v337
    %v466 = vpack.c.b16 %v346, %v338
    %v467 = vpack.c.b16 %v347, %v339
    %v468 = vpack.c.b16 %v348, %v340
    %v469 = vpack.c.b16 %v357, %v349
    %v470 = vpack.c.b16 %v358, %v350
    %v471 = vpack.c.b16 %v359, %v351
    %v472 = vpack.c.b16 %v360, %v352
    %v473 = vpack.c.b16 %v361, %v353
    %v474 = vpack.c.b16 %v362, %v354
    %v475 = vpack.c.b16 %v363, %v355
    %v476 = vpack.c.b16 %v364, %v356
    %v477 = vpack.c.b16 %v373, %v365
    %v478 = vpack.c.b16 %v374, %v366
    %v479 = vpack.c.b16 %v375, %v367
    %v480 = vpack.c.b16 %v376, %v368
    %v481 = vpack.c.b16 %v377, %v369
    %v482 = vpack.c.b16 %v378, %v370
    %v483 = vpack.c.b16 %v379, %v371
    %v484 = vpack.c.b16 %v380, %v372
    %v485 = vpack.c.b16 %v389, %v381
    %v486 = vpack.c.b16 %v390, %v382
    %v487 = vpack.c.b16 %v391, %v383
    %v488 = vpack.c.b16 %v392, %v384
    %v489 = vpack.c.b16 %v393, %v385
    %v490 = vpack.c.b16 %v394, %v386
    %v491 = vpack.c.b16 %v395, %v387
    %v492 = vpack.c.b16 %v396, %v388
    %v493 = vpack.c.b16 %v405, %v397
    %v494 = vpack.c.b16 %v406, %v398
    %v495 = vpack.c.b16 %v407, %v399
    %v496 = vpack.c.b16 %v408, %v400
    %v497 = vpack.c.b16 %v409, %v401
    %v498 = vpack.c.b16 %v410, %v402
    %v499 = vpack.c.b16 %v411, %v403
    %v500 = vpack.c.b16 %v412, %v404
    %v501 = vpack.c.b16 %v421, %v413
    %v502 = vpack.c.b16 %v422, %v414
    %v503 = vpack.c.b16 %v423, %v415
    %v504 = vpack.c.b16 %v424, %v416
    %v505 = vpack.c.b16 %v425, %v417
    %v506 = vpack.c.b16 %v426, %v418
    %v507 = vpack.c.b16 %v427, %v419
    %v508 = vpack.c.b16 %v428, %v420
    %v509 = vpack.c.b16 %v437, %v429
    %v510 = vpack.c.b16 %v438, %v430
    %v511 = vpack.c.b16 %v439, %v431
    %v512 = vpack.c.b16 %v440, %v432
    %v513 = vpack.c.b16 %v441, %v433
    %v514 = vpack.c.b16 %v442, %v434
    %v515 = vpack.c.b16 %v443, %v435
    %v516 = vpack.c.b16 %v444, %v436
    %v517 = vpack.c.b16 %v453, %v445
    %v518 = vpack.c.b16 %v454, %v446
    %v519 = vpack.c.b16 %v455, %v447
    %v520 = vpack.c.b16 %v456, %v448
    %v521 = vpack.c.b16 %v457, %v449
    %v522 = vpack.c.b16 %v458, %v450
    %v523 = vpack.c.b16 %v459, %v451
    %v524 = vpack.c.b16 %v460, %v452
    %589 = vmatpush.bf16.msra.mxu0 %v517
    %590 = vmatpush.bf16.msra.mxu0 %v509
    %591 = vmatpush.bf16.msra.mxu0 %v501
    %592 = vmatpush.bf16.msra.mxu0 %v493
    %593 = vmatpush.bf16.msra.mxu0 %v485
    %594 = vmatpush.bf16.msra.mxu0 %v477
    %595 = vmatpush.bf16.msra.mxu0 %v469
    %596 = vmatpush.bf16.msra.mxu0 %v461
    %597 = vmatmul.bf16.gmra.mxu0 %v186
    %v598 = vpop.f32.mrf.mxu0
    %v599 = vadd.f32 %v253, %v598
    %v600 = vpop.f32.mrf.mxu0
    %601 = vdwg.mxu0
    %602 = vmatpush.bf16.msra.mxu0 %v518
    %603 = vmatpush.bf16.msra.mxu0 %v510
    %604 = vmatpush.bf16.msra.mxu0 %v502
    %605 = vmatpush.bf16.msra.mxu0 %v494
    %606 = vmatpush.bf16.msra.mxu0 %v486
    %607 = vmatpush.bf16.msra.mxu0 %v478
    %608 = vmatpush.bf16.msra.mxu0 %v470
    %609 = vmatpush.bf16.msra.mxu0 %v462
    %610 = vmatmul.bf16.gmra.mxu0 %v186
    %v611 = vpop.f32.mrf.mxu0
    %v612 = vadd.f32 %v254, %v611
    %v613 = vpop.f32.mrf.mxu0
    %614 = vdwg.mxu0
    %615 = vmatpush.bf16.msra.mxu0 %v519
    %616 = vmatpush.bf16.msra.mxu0 %v511
    %617 = vmatpush.bf16.msra.mxu0 %v503
    %618 = vmatpush.bf16.msra.mxu0 %v495
    %619 = vmatpush.bf16.msra.mxu0 %v487
    %620 = vmatpush.bf16.msra.mxu0 %v479
    %621 = vmatpush.bf16.msra.mxu0 %v471
    %622 = vmatpush.bf16.msra.mxu0 %v463
    %623 = vmatmul.bf16.gmra.mxu0 %v186
    %v624 = vpop.f32.mrf.mxu0
    %v625 = vadd.f32 %v255, %v624
    %v626 = vpop.f32.mrf.mxu0
    %627 = vdwg.mxu0
    %628 = vmatpush.bf16.msra.mxu0 %v520
    %629 = vmatpush.bf16.msra.mxu0 %v512
    %630 = vmatpush.bf16.msra.mxu0 %v504
    %631 = vmatpush.bf16.msra.mxu0 %v496
    %632 = vmatpush.bf16.msra.mxu0 %v488
    %633 = vmatpush.bf16.msra.mxu0 %v480
    %634 = vmatpush.bf16.msra.mxu0 %v472
    %635 = vmatpush.bf16.msra.mxu0 %v464
    %636 = vmatmul.bf16.gmra.mxu0 %v186
    %v637 = vpop.f32.mrf.mxu0
    %v638 = vadd.f32 %v256, %v637
    %v639 = vpop.f32.mrf.mxu0
    %640 = vdwg.mxu0
    %641 = vmatpush.bf16.msra.mxu0 %v521
    %642 = vmatpush.bf16.msra.mxu0 %v513
    %643 = vmatpush.bf16.msra.mxu0 %v505
    %644 = vmatpush.bf16.msra.mxu0 %v497
    %645 = vmatpush.bf16.msra.mxu0 %v489
    %646 = vmatpush.bf16.msra.mxu0 %v481
    %647 = vmatpush.bf16.msra.mxu0 %v473
    %648 = vmatpush.bf16.msra.mxu0 %v465
    %649 = vmatmul.bf16.gmra.mxu0 %v186
    %v650 = vpop.f32.mrf.mxu0
    %v651 = vadd.f32 %v257, %v650
    %v652 = vpop.f32.mrf.mxu0
    %653 = vdwg.mxu0
    %654 = vmatpush.bf16.msra.mxu0 %v522
    %655 = vmatpush.bf16.msra.mxu0 %v514
    %656 = vmatpush.bf16.msra.mxu0 %v506
    %657 = vmatpush.bf16.msra.mxu0 %v498
    %658 = vmatpush.bf16.msra.mxu0 %v490
    %659 = vmatpush.bf16.msra.mxu0 %v482
    %660 = vmatpush.bf16.msra.mxu0 %v474
    %661 = vmatpush.bf16.msra.mxu0 %v466
    %662 = vmatmul.bf16.gmra.mxu0 %v186
    %v663 = vpop.f32.mrf.mxu0
    %v664 = vadd.f32 %v258, %v663
    %v665 = vpop.f32.mrf.mxu0
    %666 = vdwg.mxu0
    %667 = vmatpush.bf16.msra.mxu0 %v523
    %668 = vmatpush.bf16.msra.mxu0 %v515
    %669 = vmatpush.bf16.msra.mxu0 %v507
    %670 = vmatpush.bf16.msra.mxu0 %v499
    %671 = vmatpush.bf16.msra.mxu0 %v491
    %672 = vmatpush.bf16.msra.mxu0 %v483
    %673 = vmatpush.bf16.msra.mxu0 %v475
    %674 = vmatpush.bf16.msra.mxu0 %v467
    %675 = vmatmul.bf16.gmra.mxu0 %v186
    %v676 = vpop.f32.mrf.mxu0
    %v677 = vadd.f32 %v259, %v676
    %v678 = vpop.f32.mrf.mxu0
    %679 = vdwg.mxu0
    %680 = vmatpush.bf16.msra.mxu0 %v524
    %681 = vmatpush.bf16.msra.mxu0 %v516
    %682 = vmatpush.bf16.msra.mxu0 %v508
    %683 = vmatpush.bf16.msra.mxu0 %v500
    %684 = vmatpush.bf16.msra.mxu0 %v492
    %685 = vmatpush.bf16.msra.mxu0 %v484
    %686 = vmatpush.bf16.msra.mxu0 %v476
    %687 = vmatpush.bf16.msra.mxu0 %v468
    %688 = vmatmul.bf16.gmra.mxu0 %v186
    %v689 = vpop.f32.mrf.mxu0
    %v690 = vadd.f32 %v260, %v689
    %v691 = vpop.f32.mrf.mxu0
    %692 = vdwg.mxu0
    %vm693 = vcmp.ge.f32.partialorder %v599, 0.0
    %vm694 = vcmp.ge.f32.partialorder %v612, 0.0
    %vm695 = vcmp.ge.f32.partialorder %v625, 0.0
    %vm696 = vcmp.ge.f32.partialorder %v638, 0.0
    %vm697 = vcmp.ge.f32.partialorder %v651, 0.0
    %vm698 = vcmp.ge.f32.partialorder %v664, 0.0
    %vm699 = vcmp.ge.f32.partialorder %v677, 0.0
    %vm700 = vcmp.ge.f32.partialorder %v690, 0.0
    %v701 = vmul.f32 %v599, 0.01
    %v702 = vmul.f32 %v612, 0.01
    %v703 = vmul.f32 %v625, 0.01
    %v704 = vmul.f32 %v638, 0.01
    %v705 = vmul.f32 %v651, 0.01
    %v706 = vmul.f32 %v664, 0.01
    %v707 = vmul.f32 %v677, 0.01
    %v708 = vmul.f32 %v690, 0.01
    %v709 = vsel %vm693, %v599, %v701
    %v710 = vsel %vm694, %v612, %v702
    %v711 = vsel %vm695, %v625, %v703
    %v712 = vsel %vm696, %v638, %v704
    %v713 = vsel %vm697, %v651, %v705
    %v714 = vsel %vm698, %v664, %v706
    %v715 = vsel %vm699, %v677, %v707
    %v716 = vsel %vm700, %v690, %v708
    %v717 = vpack.c.bf16 %v709, %v709
    %v718 = vpack.c.bf16 %v710, %v710
    %v719 = vpack.c.bf16 %v711, %v711
    %v720 = vpack.c.bf16 %v712, %v712
    %v721 = vpack.c.bf16 %v713, %v713
    %v722 = vpack.c.bf16 %v714, %v714
    %v723 = vpack.c.bf16 %v715, %v715
    %v724 = vpack.c.bf16 %v716, %v716
    %v725 = vld [vmem:[#allocation10] sm:$0xff]
    %v726 = vld [vmem:[#allocation10 + $0x8] sm:$0xff]
    %v727 = vld [vmem:[#allocation10 + $0x10] sm:$0xff]
    %v728 = vld [vmem:[#allocation10 + $0x18] sm:$0xff]
    %v729 = vld [vmem:[#allocation10 + $0x20] sm:$0xff]
    %v730 = vld [vmem:[#allocation10 + $0x28] sm:$0xff]
    %v731 = vld [vmem:[#allocation10 + $0x30] sm:$0xff]
    %v732 = vld [vmem:[#allocation10 + $0x38] sm:$0xff]
    %v733 = vld [vmem:[#allocation10 + $0x40] sm:$0xff]
    %v734 = vld [vmem:[#allocation10 + $0x48] sm:$0xff]
    %v735 = vld [vmem:[#allocation10 + $0x50] sm:$0xff]
    %v736 = vld [vmem:[#allocation10 + $0x58] sm:$0xff]
    %v737 = vld [vmem:[#allocation10 + $0x60] sm:$0xff]
    %v738 = vld [vmem:[#allocation10 + $0x68] sm:$0xff]
    %v739 = vld [vmem:[#allocation10 + $0x70] sm:$0xff]
    %v740 = vld [vmem:[#allocation10 + $0x78] sm:$0xff]
    %v741 = vld [vmem:[#allocation10 + $0x80] sm:$0xff]
    %v742 = vld [vmem:[#allocation10 + $0x88] sm:$0xff]
    %v743 = vld [vmem:[#allocation10 + $0x90] sm:$0xff]
    %v744 = vld [vmem:[#allocation10 + $0x98] sm:$0xff]
    %v745 = vld [vmem:[#allocation10 + $0xa0] sm:$0xff]
    %v746 = vld [vmem:[#allocation10 + $0xa8] sm:$0xff]
    %v747 = vld [vmem:[#allocation10 + $0xb0] sm:$0xff]
    %v748 = vld [vmem:[#allocation10 + $0xb8] sm:$0xff]
    %v749 = vld [vmem:[#allocation10 + $0xc0] sm:$0xff]
    %v750 = vld [vmem:[#allocation10 + $0xc8] sm:$0xff]
    %v751 = vld [vmem:[#allocation10 + $0xd0] sm:$0xff]
    %v752 = vld [vmem:[#allocation10 + $0xd8] sm:$0xff]
    %v753 = vld [vmem:[#allocation10 + $0xe0] sm:$0xff]
    %v754 = vld [vmem:[#allocation10 + $0xe8] sm:$0xff]
    %v755 = vld [vmem:[#allocation10 + $0xf0] sm:$0xff]
    %v756 = vld [vmem:[#allocation10 + $0xf8] sm:$0xff]
    %v757 = vld [vmem:[#allocation10 + $0x100] sm:$0xff]
    %v758 = vld [vmem:[#allocation10 + $0x108] sm:$0xff]
    %v759 = vld [vmem:[#allocation10 + $0x110] sm:$0xff]
    %v760 = vld [vmem:[#allocation10 + $0x118] sm:$0xff]
    %v761 = vld [vmem:[#allocation10 + $0x120] sm:$0xff]
    %v762 = vld [vmem:[#allocation10 + $0x128] sm:$0xff]
    %v763 = vld [vmem:[#allocation10 + $0x130] sm:$0xff]
    %v764 = vld [vmem:[#allocation10 + $0x138] sm:$0xff]
    %v765 = vld [vmem:[#allocation10 + $0x140] sm:$0xff]
    %v766 = vld [vmem:[#allocation10 + $0x148] sm:$0xff]
    %v767 = vld [vmem:[#allocation10 + $0x150] sm:$0xff]
    %v768 = vld [vmem:[#allocation10 + $0x158] sm:$0xff]
    %v769 = vld [vmem:[#allocation10 + $0x160] sm:$0xff]
    %v770 = vld [vmem:[#allocation10 + $0x168] sm:$0xff]
    %v771 = vld [vmem:[#allocation10 + $0x170] sm:$0xff]
    %v772 = vld [vmem:[#allocation10 + $0x178] sm:$0xff]
    %v773 = vld [vmem:[#allocation10 + $0x180] sm:$0xff]
    %v774 = vld [vmem:[#allocation10 + $0x188] sm:$0xff]
    %v775 = vld [vmem:[#allocation10 + $0x190] sm:$0xff]
    %v776 = vld [vmem:[#allocation10 + $0x198] sm:$0xff]
    %v777 = vld [vmem:[#allocation10 + $0x1a0] sm:$0xff]
    %v778 = vld [vmem:[#allocation10 + $0x1a8] sm:$0xff]
    %v779 = vld [vmem:[#allocation10 + $0x1b0] sm:$0xff]
    %v780 = vld [vmem:[#allocation10 + $0x1b8] sm:$0xff]
    %v781 = vld [vmem:[#allocation10 + $0x1c0] sm:$0xff]
    %v782 = vld [vmem:[#allocation10 + $0x1c8] sm:$0xff]
    %v783 = vld [vmem:[#allocation10 + $0x1d0] sm:$0xff]
    %v784 = vld [vmem:[#allocation10 + $0x1d8] sm:$0xff]
    %v785 = vld [vmem:[#allocation10 + $0x1e0] sm:$0xff]
    %v786 = vld [vmem:[#allocation10 + $0x1e8] sm:$0xff]
    %v787 = vld [vmem:[#allocation10 + $0x1f0] sm:$0xff]
    %v788 = vld [vmem:[#allocation10 + $0x1f8] sm:$0xff]
    %v789 = vld [vmem:[#allocation10 + $0x200] sm:$0xff]
    %v790 = vld [vmem:[#allocation10 + $0x208] sm:$0xff]
    %v791 = vld [vmem:[#allocation10 + $0x210] sm:$0xff]
    %v792 = vld [vmem:[#allocation10 + $0x218] sm:$0xff]
    %v793 = vld [vmem:[#allocation10 + $0x220] sm:$0xff]
    %v794 = vld [vmem:[#allocation10 + $0x228] sm:$0xff]
    %v795 = vld [vmem:[#allocation10 + $0x230] sm:$0xff]
    %v796 = vld [vmem:[#allocation10 + $0x238] sm:$0xff]
    %v797 = vld [vmem:[#allocation10 + $0x240] sm:$0xff]
    %v798 = vld [vmem:[#allocation10 + $0x248] sm:$0xff]
    %v799 = vld [vmem:[#allocation10 + $0x250] sm:$0xff]
    %v800 = vld [vmem:[#allocation10 + $0x258] sm:$0xff]
    %v801 = vld [vmem:[#allocation10 + $0x260] sm:$0xff]
    %v802 = vld [vmem:[#allocation10 + $0x268] sm:$0xff]
    %v803 = vld [vmem:[#allocation10 + $0x270] sm:$0xff]
    %v804 = vld [vmem:[#allocation10 + $0x278] sm:$0xff]
    %v805 = vld [vmem:[#allocation10 + $0x280] sm:$0xff]
    %v806 = vld [vmem:[#allocation10 + $0x288] sm:$0xff]
    %v807 = vld [vmem:[#allocation10 + $0x290] sm:$0xff]
    %v808 = vld [vmem:[#allocation10 + $0x298] sm:$0xff]
    %v809 = vld [vmem:[#allocation10 + $0x2a0] sm:$0xff]
    %v810 = vld [vmem:[#allocation10 + $0x2a8] sm:$0xff]
    %v811 = vld [vmem:[#allocation10 + $0x2b0] sm:$0xff]
    %v812 = vld [vmem:[#allocation10 + $0x2b8] sm:$0xff]
    %v813 = vld [vmem:[#allocation10 + $0x2c0] sm:$0xff]
    %v814 = vld [vmem:[#allocation10 + $0x2c8] sm:$0xff]
    %v815 = vld [vmem:[#allocation10 + $0x2d0] sm:$0xff]
    %v816 = vld [vmem:[#allocation10 + $0x2d8] sm:$0xff]
    %v817 = vld [vmem:[#allocation10 + $0x2e0] sm:$0xff]
    %v818 = vld [vmem:[#allocation10 + $0x2e8] sm:$0xff]
    %v819 = vld [vmem:[#allocation10 + $0x2f0] sm:$0xff]
    %v820 = vld [vmem:[#allocation10 + $0x2f8] sm:$0xff]
    %v821 = vld [vmem:[#allocation10 + $0x300] sm:$0xff]
    %v822 = vld [vmem:[#allocation10 + $0x308] sm:$0xff]
    %v823 = vld [vmem:[#allocation10 + $0x310] sm:$0xff]
    %v824 = vld [vmem:[#allocation10 + $0x318] sm:$0xff]
    %v825 = vld [vmem:[#allocation10 + $0x320] sm:$0xff]
    %v826 = vld [vmem:[#allocation10 + $0x328] sm:$0xff]
    %v827 = vld [vmem:[#allocation10 + $0x330] sm:$0xff]
    %v828 = vld [vmem:[#allocation10 + $0x338] sm:$0xff]
    %v829 = vld [vmem:[#allocation10 + $0x340] sm:$0xff]
    %v830 = vld [vmem:[#allocation10 + $0x348] sm:$0xff]
    %v831 = vld [vmem:[#allocation10 + $0x350] sm:$0xff]
    %v832 = vld [vmem:[#allocation10 + $0x358] sm:$0xff]
    %v833 = vld [vmem:[#allocation10 + $0x360] sm:$0xff]
    %v834 = vld [vmem:[#allocation10 + $0x368] sm:$0xff]
    %v835 = vld [vmem:[#allocation10 + $0x370] sm:$0xff]
    %v836 = vld [vmem:[#allocation10 + $0x378] sm:$0xff]
    %v837 = vld [vmem:[#allocation10 + $0x380] sm:$0xff]
    %v838 = vld [vmem:[#allocation10 + $0x388] sm:$0xff]
    %v839 = vld [vmem:[#allocation10 + $0x390] sm:$0xff]
    %v840 = vld [vmem:[#allocation10 + $0x398] sm:$0xff]
    %v841 = vld [vmem:[#allocation10 + $0x3a0] sm:$0xff]
    %v842 = vld [vmem:[#allocation10 + $0x3a8] sm:$0xff]
    %v843 = vld [vmem:[#allocation10 + $0x3b0] sm:$0xff]
    %v844 = vld [vmem:[#allocation10 + $0x3b8] sm:$0xff]
    %v845 = vld [vmem:[#allocation10 + $0x3c0] sm:$0xff]
    %v846 = vld [vmem:[#allocation10 + $0x3c8] sm:$0xff]
    %v847 = vld [vmem:[#allocation10 + $0x3d0] sm:$0xff]
    %v848 = vld [vmem:[#allocation10 + $0x3d8] sm:$0xff]
    %v849 = vld [vmem:[#allocation10 + $0x3e0] sm:$0xff]
    %v850 = vld [vmem:[#allocation10 + $0x3e8] sm:$0xff]
    %v851 = vld [vmem:[#allocation10 + $0x3f0] sm:$0xff]
    %v852 = vld [vmem:[#allocation10 + $0x3f8] sm:$0xff]
    %v853 = vld [vmem:[%s6] sm:$0x3]
    %v855 = vperm.slane %v853, 0
    %v856 = vperm.slane %v853, 1
    %v987 = vunpack.c.l.b16 %v725
    %v988 = vunpack.c.h.b16 %v725
    %v989 = vunpack.c.l.b16 %v726
    %v990 = vunpack.c.h.b16 %v726
    %v991 = vunpack.c.l.b16 %v727
    %v992 = vunpack.c.h.b16 %v727
    %v993 = vunpack.c.l.b16 %v728
    %v994 = vunpack.c.h.b16 %v728
    %v995 = vunpack.c.l.b16 %v729
    %v996 = vunpack.c.h.b16 %v729
    %v997 = vunpack.c.l.b16 %v730
    %v998 = vunpack.c.h.b16 %v730
    %v999 = vunpack.c.l.b16 %v731
    %v1000 = vunpack.c.h.b16 %v731
    %v1001 = vunpack.c.l.b16 %v732
    %v1002 = vunpack.c.h.b16 %v732
    %v1003 = vunpack.c.l.b16 %v733
    %v1004 = vunpack.c.h.b16 %v733
    %v1005 = vunpack.c.l.b16 %v734
    %v1006 = vunpack.c.h.b16 %v734
    %v1007 = vunpack.c.l.b16 %v735
    %v1008 = vunpack.c.h.b16 %v735
    %v1009 = vunpack.c.l.b16 %v736
    %v1010 = vunpack.c.h.b16 %v736
    %v1011 = vunpack.c.l.b16 %v737
    %v1012 = vunpack.c.h.b16 %v737
    %v1013 = vunpack.c.l.b16 %v738
    %v1014 = vunpack.c.h.b16 %v738
    %v1015 = vunpack.c.l.b16 %v739
    %v1016 = vunpack.c.h.b16 %v739
    %v1017 = vunpack.c.l.b16 %v740
    %v1018 = vunpack.c.h.b16 %v740
    %v1019 = vunpack.c.l.b16 %v741
    %v1020 = vunpack.c.h.b16 %v741
    %v1021 = vunpack.c.l.b16 %v742
    %v1022 = vunpack.c.h.b16 %v742
    %v1023 = vunpack.c.l.b16 %v743
    %v1024 = vunpack.c.h.b16 %v743
    %v1025 = vunpack.c.l.b16 %v744
    %v1026 = vunpack.c.h.b16 %v744
    %v1027 = vunpack.c.l.b16 %v745
    %v1028 = vunpack.c.h.b16 %v745
    %v1029 = vunpack.c.l.b16 %v746
    %v1030 = vunpack.c.h.b16 %v746
    %v1031 = vunpack.c.l.b16 %v747
    %v1032 = vunpack.c.h.b16 %v747
    %v1033 = vunpack.c.l.b16 %v748
    %v1034 = vunpack.c.h.b16 %v748
    %v1035 = vunpack.c.l.b16 %v749
    %v1036 = vunpack.c.h.b16 %v749
    %v1037 = vunpack.c.l.b16 %v750
    %v1038 = vunpack.c.h.b16 %v750
    %v1039 = vunpack.c.l.b16 %v751
    %v1040 = vunpack.c.h.b16 %v751
    %v1041 = vunpack.c.l.b16 %v752
    %v1042 = vunpack.c.h.b16 %v752
    %v1043 = vunpack.c.l.b16 %v753
    %v1044 = vunpack.c.h.b16 %v753
    %v1045 = vunpack.c.l.b16 %v754
    %v1046 = vunpack.c.h.b16 %v754
    %v1047 = vunpack.c.l.b16 %v755
    %v1048 = vunpack.c.h.b16 %v755
    %v1049 = vunpack.c.l.b16 %v756
    %v1050 = vunpack.c.h.b16 %v756
    %v1051 = vunpack.c.l.b16 %v757
    %v1052 = vunpack.c.h.b16 %v757
    %v1053 = vunpack.c.l.b16 %v758
    %v1054 = vunpack.c.h.b16 %v758
    %v1055 = vunpack.c.l.b16 %v759
    %v1056 = vunpack.c.h.b16 %v759
    %v1057 = vunpack.c.l.b16 %v760
    %v1058 = vunpack.c.h.b16 %v760
    %v1059 = vunpack.c.l.b16 %v761
    %v1060 = vunpack.c.h.b16 %v761
    %v1061 = vunpack.c.l.b16 %v762
    %v1062 = vunpack.c.h.b16 %v762
    %v1063 = vunpack.c.l.b16 %v763
    %v1064 = vunpack.c.h.b16 %v763
    %v1065 = vunpack.c.l.b16 %v764
    %v1066 = vunpack.c.h.b16 %v764
    %v1067 = vunpack.c.l.b16 %v765
    %v1068 = vunpack.c.h.b16 %v765
    %v1069 = vunpack.c.l.b16 %v766
    %v1070 = vunpack.c.h.b16 %v766
    %v1071 = vunpack.c.l.b16 %v767
    %v1072 = vunpack.c.h.b16 %v767
    %v1073 = vunpack.c.l.b16 %v768
    %v1074 = vunpack.c.h.b16 %v768
    %v1075 = vunpack.c.l.b16 %v769
    %v1076 = vunpack.c.h.b16 %v769
    %v1077 = vunpack.c.l.b16 %v770
    %v1078 = vunpack.c.h.b16 %v770
    %v1079 = vunpack.c.l.b16 %v771
    %v1080 = vunpack.c.h.b16 %v771
    %v1081 = vunpack.c.l.b16 %v772
    %v1082 = vunpack.c.h.b16 %v772
    %v1083 = vunpack.c.l.b16 %v773
    %v1084 = vunpack.c.h.b16 %v773
    %v1085 = vunpack.c.l.b16 %v774
    %v1086 = vunpack.c.h.b16 %v774
    %v1087 = vunpack.c.l.b16 %v775
    %v1088 = vunpack.c.h.b16 %v775
    %v1089 = vunpack.c.l.b16 %v776
    %v1090 = vunpack.c.h.b16 %v776
    %v1091 = vunpack.c.l.b16 %v777
    %v1092 = vunpack.c.h.b16 %v777
    %v1093 = vunpack.c.l.b16 %v778
    %v1094 = vunpack.c.h.b16 %v778
    %v1095 = vunpack.c.l.b16 %v779
    %v1096 = vunpack.c.h.b16 %v779
    %v1097 = vunpack.c.l.b16 %v780
    %v1098 = vunpack.c.h.b16 %v780
    %v1099 = vunpack.c.l.b16 %v781
    %v1100 = vunpack.c.h.b16 %v781
    %v1101 = vunpack.c.l.b16 %v782
    %v1102 = vunpack.c.h.b16 %v782
    %v1103 = vunpack.c.l.b16 %v783
    %v1104 = vunpack.c.h.b16 %v783
    %v1105 = vunpack.c.l.b16 %v784
    %v1106 = vunpack.c.h.b16 %v784
    %v1107 = vunpack.c.l.b16 %v785
    %v1108 = vunpack.c.h.b16 %v785
    %v1109 = vunpack.c.l.b16 %v786
    %v1110 = vunpack.c.h.b16 %v786
    %v1111 = vunpack.c.l.b16 %v787
    %v1112 = vunpack.c.h.b16 %v787
    %v1113 = vunpack.c.l.b16 %v788
    %v1114 = vunpack.c.h.b16 %v788
    %v1115 = vunpack.c.l.b16 %v789
    %v1116 = vunpack.c.h.b16 %v789
    %v1117 = vunpack.c.l.b16 %v790
    %v1118 = vunpack.c.h.b16 %v790
    %v1119 = vunpack.c.l.b16 %v791
    %v1120 = vunpack.c.h.b16 %v791
    %v1121 = vunpack.c.l.b16 %v792
    %v1122 = vunpack.c.h.b16 %v792
    %v1123 = vunpack.c.l.b16 %v793
    %v1124 = vunpack.c.h.b16 %v793
    %v1125 = vunpack.c.l.b16 %v794
    %v1126 = vunpack.c.h.b16 %v794
    %v1127 = vunpack.c.l.b16 %v795
    %v1128 = vunpack.c.h.b16 %v795
    %v1129 = vunpack.c.l.b16 %v796
    %v1130 = vunpack.c.h.b16 %v796
    %v1131 = vunpack.c.l.b16 %v797
    %v1132 = vunpack.c.h.b16 %v797
    %v1133 = vunpack.c.l.b16 %v798
    %v1134 = vunpack.c.h.b16 %v798
    %v1135 = vunpack.c.l.b16 %v799
    %v1136 = vunpack.c.h.b16 %v799
    %v1137 = vunpack.c.l.b16 %v800
    %v1138 = vunpack.c.h.b16 %v800
    %v1139 = vunpack.c.l.b16 %v801
    %v1140 = vunpack.c.h.b16 %v801
    %v1141 = vunpack.c.l.b16 %v802
    %v1142 = vunpack.c.h.b16 %v802
    %v1143 = vunpack.c.l.b16 %v803
    %v1144 = vunpack.c.h.b16 %v803
    %v1145 = vunpack.c.l.b16 %v804
    %v1146 = vunpack.c.h.b16 %v804
    %v1147 = vunpack.c.l.b16 %v805
    %v1148 = vunpack.c.h.b16 %v805
    %v1149 = vunpack.c.l.b16 %v806
    %v1150 = vunpack.c.h.b16 %v806
    %v1151 = vunpack.c.l.b16 %v807
    %v1152 = vunpack.c.h.b16 %v807
    %v1153 = vunpack.c.l.b16 %v808
    %v1154 = vunpack.c.h.b16 %v808
    %v1155 = vunpack.c.l.b16 %v809
    %v1156 = vunpack.c.h.b16 %v809
    %v1157 = vunpack.c.l.b16 %v810
    %v1158 = vunpack.c.h.b16 %v810
    %v1159 = vunpack.c.l.b16 %v811
    %v1160 = vunpack.c.h.b16 %v811
    %v1161 = vunpack.c.l.b16 %v812
    %v1162 = vunpack.c.h.b16 %v812
    %v1163 = vunpack.c.l.b16 %v813
    %v1164 = vunpack.c.h.b16 %v813
    %v1165 = vunpack.c.l.b16 %v814
    %v1166 = vunpack.c.h.b16 %v814
    %v1167 = vunpack.c.l.b16 %v815
    %v1168 = vunpack.c.h.b16 %v815
    %v1169 = vunpack.c.l.b16 %v816
    %v1170 = vunpack.c.h.b16 %v816
    %v1171 = vunpack.c.l.b16 %v817
    %v1172 = vunpack.c.h.b16 %v817
    %v1173 = vunpack.c.l.b16 %v818
    %v1174 = vunpack.c.h.b16 %v818
    %v1175 = vunpack.c.l.b16 %v819
    %v1176 = vunpack.c.h.b16 %v819
    %v1177 = vunpack.c.l.b16 %v820
    %v1178 = vunpack.c.h.b16 %v820
    %v1179 = vunpack.c.l.b16 %v821
    %v1180 = vunpack.c.h.b16 %v821
    %v1181 = vunpack.c.l.b16 %v822
    %v1182 = vunpack.c.h.b16 %v822
    %v1183 = vunpack.c.l.b16 %v823
    %v1184 = vunpack.c.h.b16 %v823
    %v1185 = vunpack.c.l.b16 %v824
    %v1186 = vunpack.c.h.b16 %v824
    %v1187 = vunpack.c.l.b16 %v825
    %v1188 = vunpack.c.h.b16 %v825
    %v1189 = vunpack.c.l.b16 %v826
    %v1190 = vunpack.c.h.b16 %v826
    %v1191 = vunpack.c.l.b16 %v827
    %v1192 = vunpack.c.h.b16 %v827
    %v1193 = vunpack.c.l.b16 %v828
    %v1194 = vunpack.c.h.b16 %v828
    %v1195 = vunpack.c.l.b16 %v829
    %v1196 = vunpack.c.h.b16 %v829
    %v1197 = vunpack.c.l.b16 %v830
    %v1198 = vunpack.c.h.b16 %v830
    %v1199 = vunpack.c.l.b16 %v831
    %v1200 = vunpack.c.h.b16 %v831
    %v1201 = vunpack.c.l.b16 %v832
    %v1202 = vunpack.c.h.b16 %v832
    %v1203 = vunpack.c.l.b16 %v833
    %v1204 = vunpack.c.h.b16 %v833
    %v1205 = vunpack.c.l.b16 %v834
    %v1206 = vunpack.c.h.b16 %v834
    %v1207 = vunpack.c.l.b16 %v835
    %v1208 = vunpack.c.h.b16 %v835
    %v1209 = vunpack.c.l.b16 %v836
    %v1210 = vunpack.c.h.b16 %v836
    %v1211 = vunpack.c.l.b16 %v837
    %v1212 = vunpack.c.h.b16 %v837
    %v1213 = vunpack.c.l.b16 %v838
    %v1214 = vunpack.c.h.b16 %v838
    %v1215 = vunpack.c.l.b16 %v839
    %v1216 = vunpack.c.h.b16 %v839
    %v1217 = vunpack.c.l.b16 %v840
    %v1218 = vunpack.c.h.b16 %v840
    %v1219 = vunpack.c.l.b16 %v841
    %v1220 = vunpack.c.h.b16 %v841
    %v1221 = vunpack.c.l.b16 %v842
    %v1222 = vunpack.c.h.b16 %v842
    %v1223 = vunpack.c.l.b16 %v843
    %v1224 = vunpack.c.h.b16 %v843
    %v1225 = vunpack.c.l.b16 %v844
    %v1226 = vunpack.c.h.b16 %v844
    %v1227 = vunpack.c.l.b16 %v845
    %v1228 = vunpack.c.h.b16 %v845
    %v1229 = vunpack.c.l.b16 %v846
    %v1230 = vunpack.c.h.b16 %v846
    %v1231 = vunpack.c.l.b16 %v847
    %v1232 = vunpack.c.h.b16 %v847
    %v1233 = vunpack.c.l.b16 %v848
    %v1234 = vunpack.c.h.b16 %v848
    %v1235 = vunpack.c.l.b16 %v849
    %v1236 = vunpack.c.h.b16 %v849
    %v1237 = vunpack.c.l.b16 %v850
    %v1238 = vunpack.c.h.b16 %v850
    %v1239 = vunpack.c.l.b16 %v851
    %v1240 = vunpack.c.h.b16 %v851
    %v1241 = vunpack.c.l.b16 %v852
    %v1242 = vunpack.c.h.b16 %v852
    %v1243 = vpack.c.b16 %v989, %v987
    %v1244 = vpack.c.b16 %v990, %v988
    %v1245 = vpack.c.b16 %v993, %v991
    %v1246 = vpack.c.b16 %v994, %v992
    %v1247 = vpack.c.b16 %v997, %v995
    %v1248 = vpack.c.b16 %v998, %v996
    %v1249 = vpack.c.b16 %v1001, %v999
    %v1250 = vpack.c.b16 %v1002, %v1000
    %v1251 = vpack.c.b16 %v1005, %v1003
    %v1252 = vpack.c.b16 %v1006, %v1004
    %v1253 = vpack.c.b16 %v1009, %v1007
    %v1254 = vpack.c.b16 %v1010, %v1008
    %v1255 = vpack.c.b16 %v1013, %v1011
    %v1256 = vpack.c.b16 %v1014, %v1012
    %v1257 = vpack.c.b16 %v1017, %v1015
    %v1258 = vpack.c.b16 %v1018, %v1016
    %v1259 = vpack.c.b16 %v1021, %v1019
    %v1260 = vpack.c.b16 %v1022, %v1020
    %v1261 = vpack.c.b16 %v1025, %v1023
    %v1262 = vpack.c.b16 %v1026, %v1024
    %v1263 = vpack.c.b16 %v1029, %v1027
    %v1264 = vpack.c.b16 %v1030, %v1028
    %v1265 = vpack.c.b16 %v1033, %v1031
    %v1266 = vpack.c.b16 %v1034, %v1032
    %v1267 = vpack.c.b16 %v1037, %v1035
    %v1268 = vpack.c.b16 %v1038, %v1036
    %v1269 = vpack.c.b16 %v1041, %v1039
    %v1270 = vpack.c.b16 %v1042, %v1040
    %v1271 = vpack.c.b16 %v1045, %v1043
    %v1272 = vpack.c.b16 %v1046, %v1044
    %v1273 = vpack.c.b16 %v1049, %v1047
    %v1274 = vpack.c.b16 %v1050, %v1048
    %v1275 = vpack.c.b16 %v1053, %v1051
    %v1276 = vpack.c.b16 %v1054, %v1052
    %v1277 = vpack.c.b16 %v1057, %v1055
    %v1278 = vpack.c.b16 %v1058, %v1056
    %v1279 = vpack.c.b16 %v1061, %v1059
    %v1280 = vpack.c.b16 %v1062, %v1060
    %v1281 = vpack.c.b16 %v1065, %v1063
    %v1282 = vpack.c.b16 %v1066, %v1064
    %v1283 = vpack.c.b16 %v1069, %v1067
    %v1284 = vpack.c.b16 %v1070, %v1068
    %v1285 = vpack.c.b16 %v1073, %v1071
    %v1286 = vpack.c.b16 %v1074, %v1072
    %v1287 = vpack.c.b16 %v1077, %v1075
    %v1288 = vpack.c.b16 %v1078, %v1076
    %v1289 = vpack.c.b16 %v1081, %v1079
    %v1290 = vpack.c.b16 %v1082, %v1080
    %v1291 = vpack.c.b16 %v1085, %v1083
    %v1292 = vpack.c.b16 %v1086, %v1084
    %v1293 = vpack.c.b16 %v1089, %v1087
    %v1294 = vpack.c.b16 %v1090, %v1088
    %v1295 = vpack.c.b16 %v1093, %v1091
    %v1296 = vpack.c.b16 %v1094, %v1092
    %v1297 = vpack.c.b16 %v1097, %v1095
    %v1298 = vpack.c.b16 %v1098, %v1096
    %v1299 = vpack.c.b16 %v1101, %v1099
    %v1300 = vpack.c.b16 %v1102, %v1100
    %v1301 = vpack.c.b16 %v1105, %v1103
    %v1302 = vpack.c.b16 %v1106, %v1104
    %v1303 = vpack.c.b16 %v1109, %v1107
    %v1304 = vpack.c.b16 %v1110, %v1108
    %v1305 = vpack.c.b16 %v1113, %v1111
    %v1306 = vpack.c.b16 %v1114, %v1112
    %v1307 = vpack.c.b16 %v1117, %v1115
    %v1308 = vpack.c.b16 %v1118, %v1116
    %v1309 = vpack.c.b16 %v1121, %v1119
    %v1310 = vpack.c.b16 %v1122, %v1120
    %v1311 = vpack.c.b16 %v1125, %v1123
    %v1312 = vpack.c.b16 %v1126, %v1124
    %v1313 = vpack.c.b16 %v1129, %v1127
    %v1314 = vpack.c.b16 %v1130, %v1128
    %v1315 = vpack.c.b16 %v1133, %v1131
    %v1316 = vpack.c.b16 %v1134, %v1132
    %v1317 = vpack.c.b16 %v1137, %v1135
    %v1318 = vpack.c.b16 %v1138, %v1136
    %v1319 = vpack.c.b16 %v1141, %v1139
    %v1320 = vpack.c.b16 %v1142, %v1140
    %v1321 = vpack.c.b16 %v1145, %v1143
    %v1322 = vpack.c.b16 %v1146, %v1144
    %v1323 = vpack.c.b16 %v1149, %v1147
    %v1324 = vpack.c.b16 %v1150, %v1148
    %v1325 = vpack.c.b16 %v1153, %v1151
    %v1326 = vpack.c.b16 %v1154, %v1152
    %v1327 = vpack.c.b16 %v1157, %v1155
    %v1328 = vpack.c.b16 %v1158, %v1156
    %v1329 = vpack.c.b16 %v1161, %v1159
    %v1330 = vpack.c.b16 %v1162, %v1160
    %v1331 = vpack.c.b16 %v1165, %v1163
    %v1332 = vpack.c.b16 %v1166, %v1164
    %v1333 = vpack.c.b16 %v1169, %v1167
    %v1334 = vpack.c.b16 %v1170, %v1168
    %v1335 = vpack.c.b16 %v1173, %v1171
    %v1336 = vpack.c.b16 %v1174, %v1172
    %v1337 = vpack.c.b16 %v1177, %v1175
    %v1338 = vpack.c.b16 %v1178, %v1176
    %v1339 = vpack.c.b16 %v1181, %v1179
    %v1340 = vpack.c.b16 %v1182, %v1180
    %v1341 = vpack.c.b16 %v1185, %v1183
    %v1342 = vpack.c.b16 %v1186, %v1184
    %v1343 = vpack.c.b16 %v1189, %v1187
    %v1344 = vpack.c.b16 %v1190, %v1188
    %v1345 = vpack.c.b16 %v1193, %v1191
    %v1346 = vpack.c.b16 %v1194, %v1192
    %v1347 = vpack.c.b16 %v1197, %v1195
    %v1348 = vpack.c.b16 %v1198, %v1196
    %v1349 = vpack.c.b16 %v1201, %v1199
    %v1350 = vpack.c.b16 %v1202, %v1200
    %v1351 = vpack.c.b16 %v1205, %v1203
    %v1352 = vpack.c.b16 %v1206, %v1204
    %v1353 = vpack.c.b16 %v1209, %v1207
    %v1354 = vpack.c.b16 %v1210, %v1208
    %v1355 = vpack.c.b16 %v1213, %v1211
    %v1356 = vpack.c.b16 %v1214, %v1212
    %v1357 = vpack.c.b16 %v1217, %v1215
    %v1358 = vpack.c.b16 %v1218, %v1216
    %v1359 = vpack.c.b16 %v1221, %v1219
    %v1360 = vpack.c.b16 %v1222, %v1220
    %v1361 = vpack.c.b16 %v1225, %v1223
    %v1362 = vpack.c.b16 %v1226, %v1224
    %v1363 = vpack.c.b16 %v1229, %v1227
    %v1364 = vpack.c.b16 %v1230, %v1228
    %v1365 = vpack.c.b16 %v1233, %v1231
    %v1366 = vpack.c.b16 %v1234, %v1232
    %v1367 = vpack.c.b16 %v1237, %v1235
    %v1368 = vpack.c.b16 %v1238, %v1236
    %v1369 = vpack.c.b16 %v1241, %v1239
    %v1370 = vpack.c.b16 %v1242, %v1240
    %1499 = vmatpush.bf16.msra.mxu0 %v1257
    %1500 = vmatpush.bf16.msra.mxu0 %v1255
    %1501 = vmatpush.bf16.msra.mxu0 %v1253
    %1502 = vmatpush.bf16.msra.mxu0 %v1251
    %1503 = vmatpush.bf16.msra.mxu0 %v1249
    %1504 = vmatpush.bf16.msra.mxu0 %v1247
    %1505 = vmatpush.bf16.msra.mxu0 %v1245
    %1506 = vmatpush.bf16.msra.mxu0 %v1243
    %1507 = vmatmul.bf16.gmra.mxu0 %v717
    %v1508 = vpop.f32.mrf.mxu0
    %v1509 = vadd.f32 %v855, %v1508
    %v1510 = vpop.f32.mrf.mxu0
    %1511 = vdwg.mxu0
    %1512 = vmatpush.bf16.msra.mxu0 %v1273
    %1513 = vmatpush.bf16.msra.mxu0 %v1271
    %1514 = vmatpush.bf16.msra.mxu0 %v1269
    %1515 = vmatpush.bf16.msra.mxu0 %v1267
    %1516 = vmatpush.bf16.msra.mxu0 %v1265
    %1517 = vmatpush.bf16.msra.mxu0 %v1263
    %1518 = vmatpush.bf16.msra.mxu0 %v1261
    %1519 = vmatpush.bf16.msra.mxu0 %v1259
    %1520 = vmatmul.bf16.gmra.mxu0 %v718
    %v1521 = vpop.f32.mrf.mxu0
    %v1522 = vadd.f32 %v1509, %v1521
    %v1523 = vpop.f32.mrf.mxu0
    %1524 = vdwg.mxu0
    %1525 = vmatpush.bf16.msra.mxu0 %v1289
    %1526 = vmatpush.bf16.msra.mxu0 %v1287
    %1527 = vmatpush.bf16.msra.mxu0 %v1285
    %1528 = vmatpush.bf16.msra.mxu0 %v1283
    %1529 = vmatpush.bf16.msra.mxu0 %v1281
    %1530 = vmatpush.bf16.msra.mxu0 %v1279
    %1531 = vmatpush.bf16.msra.mxu0 %v1277
    %1532 = vmatpush.bf16.msra.mxu0 %v1275
    %1533 = vmatmul.bf16.gmra.mxu0 %v719
    %v1534 = vpop.f32.mrf.mxu0
    %v1535 = vadd.f32 %v1522, %v1534
    %v1536 = vpop.f32.mrf.mxu0
    %1537 = vdwg.mxu0
    %1538 = vmatpush.bf16.msra.mxu0 %v1305
    %1539 = vmatpush.bf16.msra.mxu0 %v1303
    %1540 = vmatpush.bf16.msra.mxu0 %v1301
    %1541 = vmatpush.bf16.msra.mxu0 %v1299
    %1542 = vmatpush.bf16.msra.mxu0 %v1297
    %1543 = vmatpush.bf16.msra.mxu0 %v1295
    %1544 = vmatpush.bf16.msra.mxu0 %v1293
    %1545 = vmatpush.bf16.msra.mxu0 %v1291
    %1546 = vmatmul.bf16.gmra.mxu0 %v720
    %v1547 = vpop.f32.mrf.mxu0
    %v1548 = vadd.f32 %v1535, %v1547
    %v1549 = vpop.f32.mrf.mxu0
    %1550 = vdwg.mxu0
    %1551 = vmatpush.bf16.msra.mxu0 %v1321
    %1552 = vmatpush.bf16.msra.mxu0 %v1319
    %1553 = vmatpush.bf16.msra.mxu0 %v1317
    %1554 = vmatpush.bf16.msra.mxu0 %v1315
    %1555 = vmatpush.bf16.msra.mxu0 %v1313
    %1556 = vmatpush.bf16.msra.mxu0 %v1311
    %1557 = vmatpush.bf16.msra.mxu0 %v1309
    %1558 = vmatpush.bf16.msra.mxu0 %v1307
    %1559 = vmatmul.bf16.gmra.mxu0 %v721
    %v1560 = vpop.f32.mrf.mxu0
    %v1561 = vadd.f32 %v1548, %v1560
    %v1562 = vpop.f32.mrf.mxu0
    %1563 = vdwg.mxu0
    %1564 = vmatpush.bf16.msra.mxu0 %v1337
    %1565 = vmatpush.bf16.msra.mxu0 %v1335
    %1566 = vmatpush.bf16.msra.mxu0 %v1333
    %1567 = vmatpush.bf16.msra.mxu0 %v1331
    %1568 = vmatpush.bf16.msra.mxu0 %v1329
    %1569 = vmatpush.bf16.msra.mxu0 %v1327
    %1570 = vmatpush.bf16.msra.mxu0 %v1325
    %1571 = vmatpush.bf16.msra.mxu0 %v1323
    %1572 = vmatmul.bf16.gmra.mxu0 %v722
    %v1573 = vpop.f32.mrf.mxu0
    %v1574 = vadd.f32 %v1561, %v1573
    %v1575 = vpop.f32.mrf.mxu0
    %1576 = vdwg.mxu0
    %1577 = vmatpush.bf16.msra.mxu0 %v1353
    %1578 = vmatpush.bf16.msra.mxu0 %v1351
    %1579 = vmatpush.bf16.msra.mxu0 %v1349
    %1580 = vmatpush.bf16.msra.mxu0 %v1347
    %1581 = vmatpush.bf16.msra.mxu0 %v1345
    %1582 = vmatpush.bf16.msra.mxu0 %v1343
    %1583 = vmatpush.bf16.msra.mxu0 %v1341
    %1584 = vmatpush.bf16.msra.mxu0 %v1339
    %1585 = vmatmul.bf16.gmra.mxu0 %v723
    %v1586 = vpop.f32.mrf.mxu0
    %v1587 = vadd.f32 %v1574, %v1586
    %v1588 = vpop.f32.mrf.mxu0
    %1589 = vdwg.mxu0
    %1590 = vmatpush.bf16.msra.mxu0 %v1369
    %1591 = vmatpush.bf16.msra.mxu0 %v1367
    %1592 = vmatpush.bf16.msra.mxu0 %v1365
    %1593 = vmatpush.bf16.msra.mxu0 %v1363
    %1594 = vmatpush.bf16.msra.mxu0 %v1361
    %1595 = vmatpush.bf16.msra.mxu0 %v1359
    %1596 = vmatpush.bf16.msra.mxu0 %v1357
    %1597 = vmatpush.bf16.msra.mxu0 %v1355
    %1598 = vmatmul.bf16.gmra.mxu0 %v724
    %v1599 = vpop.f32.mrf.mxu0
    %v1600 = vadd.f32 %v1587, %v1599
    %v1601 = vpop.f32.mrf.mxu0
    %1602 = vdwg.mxu0
    %1603 = vmatpush.bf16.msra.mxu0 %v1258
    %1604 = vmatpush.bf16.msra.mxu0 %v1256
    %1605 = vmatpush.bf16.msra.mxu0 %v1254
    %1606 = vmatpush.bf16.msra.mxu0 %v1252
    %1607 = vmatpush.bf16.msra.mxu0 %v1250
    %1608 = vmatpush.bf16.msra.mxu0 %v1248
    %1609 = vmatpush.bf16.msra.mxu0 %v1246
    %1610 = vmatpush.bf16.msra.mxu0 %v1244
    %1611 = vmatmul.bf16.gmra.mxu0 %v717
    %v1612 = vpop.f32.mrf.mxu0
    %v1613 = vadd.f32 %v856, %v1612
    %v1614 = vpop.f32.mrf.mxu0
    %1615 = vdwg.mxu0
    %1616 = vmatpush.bf16.msra.mxu0 %v1274
    %1617 = vmatpush.bf16.msra.mxu0 %v1272
    %1618 = vmatpush.bf16.msra.mxu0 %v1270
    %1619 = vmatpush.bf16.msra.mxu0 %v1268
    %1620 = vmatpush.bf16.msra.mxu0 %v1266
    %1621 = vmatpush.bf16.msra.mxu0 %v1264
    %1622 = vmatpush.bf16.msra.mxu0 %v1262
    %1623 = vmatpush.bf16.msra.mxu0 %v1260
    %1624 = vmatmul.bf16.gmra.mxu0 %v718
    %v1625 = vpop.f32.mrf.mxu0
    %v1626 = vadd.f32 %v1613, %v1625
    %v1627 = vpop.f32.mrf.mxu0
    %1628 = vdwg.mxu0
    %1629 = vmatpush.bf16.msra.mxu0 %v1290
    %1630 = vmatpush.bf16.msra.mxu0 %v1288
    %1631 = vmatpush.bf16.msra.mxu0 %v1286
    %1632 = vmatpush.bf16.msra.mxu0 %v1284
    %1633 = vmatpush.bf16.msra.mxu0 %v1282
    %1634 = vmatpush.bf16.msra.mxu0 %v1280
    %1635 = vmatpush.bf16.msra.mxu0 %v1278
    %1636 = vmatpush.bf16.msra.mxu0 %v1276
    %1637 = vmatmul.bf16.gmra.mxu0 %v719
    %v1638 = vpop.f32.mrf.mxu0
    %v1639 = vadd.f32 %v1626, %v1638
    %v1640 = vpop.f32.mrf.mxu0
    %1641 = vdwg.mxu0
    %1642 = vmatpush.bf16.msra.mxu0 %v1306
    %1643 = vmatpush.bf16.msra.mxu0 %v1304
    %1644 = vmatpush.bf16.msra.mxu0 %v1302
    %1645 = vmatpush.bf16.msra.mxu0 %v1300
    %1646 = vmatpush.bf16.msra.mxu0 %v1298
    %1647 = vmatpush.bf16.msra.mxu0 %v1296
    %1648 = vmatpush.bf16.msra.mxu0 %v1294
    %1649 = vmatpush.bf16.msra.mxu0 %v1292
    %1650 = vmatmul.bf16.gmra.mxu0 %v720
    %v1651 = vpop.f32.mrf.mxu0
    %v1652 = vadd.f32 %v1639, %v1651
    %v1653 = vpop.f32.mrf.mxu0
    %1654 = vdwg.mxu0
    %1655 = vmatpush.bf16.msra.mxu0 %v1322
    %1656 = vmatpush.bf16.msra.mxu0 %v1320
    %1657 = vmatpush.bf16.msra.mxu0 %v1318
    %1658 = vmatpush.bf16.msra.mxu0 %v1316
    %1659 = vmatpush.bf16.msra.mxu0 %v1314
    %1660 = vmatpush.bf16.msra.mxu0 %v1312
    %1661 = vmatpush.bf16.msra.mxu0 %v1310
    %1662 = vmatpush.bf16.msra.mxu0 %v1308
    %1663 = vmatmul.bf16.gmra.mxu0 %v721
    %v1664 = vpop.f32.mrf.mxu0
    %v1665 = vadd.f32 %v1652, %v1664
    %v1666 = vpop.f32.mrf.mxu0
    %1667 = vdwg.mxu0
    %1668 = vmatpush.bf16.msra.mxu0 %v1338
    %1669 = vmatpush.bf16.msra.mxu0 %v1336
    %1670 = vmatpush.bf16.msra.mxu0 %v1334
    %1671 = vmatpush.bf16.msra.mxu0 %v1332
    %1672 = vmatpush.bf16.msra.mxu0 %v1330
    %1673 = vmatpush.bf16.msra.mxu0 %v1328
    %1674 = vmatpush.bf16.msra.mxu0 %v1326
    %1675 = vmatpush.bf16.msra.mxu0 %v1324
    %1676 = vmatmul.bf16.gmra.mxu0 %v722
    %v1677 = vpop.f32.mrf.mxu0
    %v1678 = vadd.f32 %v1665, %v1677
    %v1679 = vpop.f32.mrf.mxu0
    %1680 = vdwg.mxu0
    %1681 = vmatpush.bf16.msra.mxu0 %v1354
    %1682 = vmatpush.bf16.msra.mxu0 %v1352
    %1683 = vmatpush.bf16.msra.mxu0 %v1350
    %1684 = vmatpush.bf16.msra.mxu0 %v1348
    %1685 = vmatpush.bf16.msra.mxu0 %v1346
    %1686 = vmatpush.bf16.msra.mxu0 %v1344
    %1687 = vmatpush.bf16.msra.mxu0 %v1342
    %1688 = vmatpush.bf16.msra.mxu0 %v1340
    %1689 = vmatmul.bf16.gmra.mxu0 %v723
    %v1690 = vpop.f32.mrf.mxu0
    %v1691 = vadd.f32 %v1678, %v1690
    %v1692 = vpop.f32.mrf.mxu0
    %1693 = vdwg.mxu0
    %1694 = vmatpush.bf16.msra.mxu0 %v1370
    %1695 = vmatpush.bf16.msra.mxu0 %v1368
    %1696 = vmatpush.bf16.msra.mxu0 %v1366
    %1697 = vmatpush.bf16.msra.mxu0 %v1364
    %1698 = vmatpush.bf16.msra.mxu0 %v1362
    %1699 = vmatpush.bf16.msra.mxu0 %v1360
    %1700 = vmatpush.bf16.msra.mxu0 %v1358
    %1701 = vmatpush.bf16.msra.mxu0 %v1356
    %1702 = vmatmul.bf16.gmra.mxu0 %v724
    %v1703 = vpop.f32.mrf.mxu0
    %v1704 = vadd.f32 %v1691, %v1703
    %v1705 = vpop.f32.mrf.mxu0
    %1706 = vdwg.mxu0
    %v1707 = vmin.f32 %v1600, 20.0
    %v1708 = vmin.f32 %v1704, 20.0
    %vm1709 = vcmp.gt.f32.partialorder %v1600, 20.0
    %vm1710 = vcmp.gt.f32.partialorder %v1704, 20.0
    %v1711 = vmul.f32 %v1707, 1.442695
    %v1712 = vpow.pop %v1711
    %v1713 = vmul.f32 %v1708, 1.442695
    %v1714 = vpow.pop %v1713
    %v1715 = vadd.f32 %v1712, 1.0
    %v1716 = vlog2.pop %v1715
    %v1717 = vmul.f32 %v1716, 0.6931472
    %v1718 = vmul.f32 -0.5, %v1712
    %v1719 = vadd.f32 %v1718, 1.0
    %v1720 = vmul.f32 %v1719, %v1712
    %v1721 = vand.u32 2147483647, %v1712
    %vm1722 = vcmp.lt.f32.partialorder %v1721, 0.0004427343
    %v1723 = vsel %vm1722, %v1720, %v1717
    %v1724 = vadd.f32 %v1714, 1.0
    %v1725 = vlog2.pop %v1724
    %v1726 = vmul.f32 %v1725, 0.6931472
    %v1727 = vmul.f32 -0.5, %v1714
    %v1728 = vadd.f32 %v1727, 1.0
    %v1729 = vmul.f32 %v1728, %v1714
    %v1730 = vand.u32 2147483647, %v1714
    %vm1731 = vcmp.lt.f32.partialorder %v1730, 0.0004427343
    %v1732 = vsel %vm1731, %v1729, %v1726
    %v1733 = vsel %vm1709, %v1600, %v1723
    %v1734 = vsel %vm1710, %v1704, %v1732
    %1735 = vst [vmem:[#allocation11] sm:$0xff] %v1733
    %1736 = vst [vmem:[#allocation11 + $0x8] sm:$0xff] %v1734
    // Predicated region
    $region50: #{tpu_custom_call.1} parent=1 // pred_check
      _
    $region51: #{tpu_custom_call.1} parent=1 // pred_check_branch
      %1738 = sbr.rel (0) target = $region53
    $region52: #{tpu_custom_call.1} parent=1 // pred_region
      %1740 = vsyncadd [#allocation4], 0
      %s1742 = sshll.u32 [#allocation11], 4
      %s1743 = int_to_ptr.vmem [resolvable:$true] %s1742
      %s1744 = sshll.u32 %s7, 4
      %s1745 = int_to_ptr.hbm [resolvable:$true] %s1744
      %1747 = dma.vmem_to_hbm [thread:$0]  %s1743, 256, %s1745, [#allocation4]
    $region53: #{tpu_custom_call.1} parent=1 // pred_fallthru
      _
    // Predicated region
    $region54: #{tpu_custom_call.1} parent=1 // pred_check
      _
    $region55: #{tpu_custom_call.1} parent=1 // pred_check_branch
      %1749 = sbr.rel (0) target = $region57
    $region56: #{tpu_custom_call.1} parent=1 // pred_region
      %1751 = dma.done [#allocation4], 256
    $region57: #{tpu_custom_call.1} parent=1 // pred_fallthru
      _
    %1752 = vsyncpa [#allocation3], 1
    %1753 = vsyncpa [#allocation6], 1
    %1754 = vsyncpa [#allocation9], 1
    %1755 = vsyncpa [#allocation4], 1

</llo_original>
